<compile_context>
chip_gen: v7x
topology: tpu7x:2x2x1
jax: 0.10.0
libtpu: 0.0.40
codegen_flags: <defaults>
</compile_context>

<pallas_src>
import functools

import jax
import jax.numpy as jnp
from jax.experimental import pallas as pl
from jax.experimental.pallas import tpu as pltpu

IN_DIM = 128
H1_DIM = 256
H2_DIM = 512
OUT_DIM = 784
OUT_PAD = 896  # 7 * 128: lane-dense padded width of the final layer
NEG_SLOPE = 0.01  # PyTorch nn.LeakyReLU default


def _leaky_relu(x):
    return jnp.where(x > 0, x, NEG_SLOPE * x)


def _round_up(n, m):
    return ((n + m - 1) // m) * m


def gnet_kernel(x_ref, w1_ref, b1_ref, w2_ref, b2_ref, w3_ref, b3_ref, o_ref):
    # x / w* are bf16 (cast once in prepare_params / wrapper); accumulate in
    # f32, bias add + LeakyReLU in f32, cast back to the weight dtype only to
    # feed the next MXU matmul.  Final cast to o_ref.dtype (bf16 by default).
    x = x_ref[...]

    h1 = jnp.dot(x, w1_ref[...], preferred_element_type=jnp.float32) + b1_ref[...]
    h1 = _leaky_relu(h1).astype(w2_ref.dtype)

    h2 = jnp.dot(h1, w2_ref[...], preferred_element_type=jnp.float32) + b2_ref[...]
    h2 = _leaky_relu(h2).astype(w3_ref.dtype)

    out = jnp.dot(h2, w3_ref[...], preferred_element_type=jnp.float32) + b3_ref[...]
    o_ref[...] = out.astype(o_ref.dtype)


def prepare_params(w1, b1, w2, b2, w3, b3, compute_dtype=jnp.bfloat16):
    """Cast weights to the compute dtype and pad the last layer to a lane-dense
    896 columns ONCE (outside the per-call path).  Pad columns are zero, so the
    result is exact after slicing back to 784."""
    w1c = w1.astype(compute_dtype)
    w2c = w2.astype(compute_dtype)
    w3c = jnp.pad(w3, ((0, 0), (0, OUT_PAD - OUT_DIM))).astype(compute_dtype)
    b1c = b1.astype(jnp.float32)
    b2c = b2.astype(jnp.float32)
    b3c = jnp.pad(b3, ((0, 0), (0, OUT_PAD - OUT_DIM))).astype(jnp.float32)
    return w1c, b1c, w2c, b2c, w3c, b3c


@functools.partial(
    jax.jit, static_argnames=("batch_tile", "out_dtype", "return_padded"))
def gnet_forward(x, w1, b1, w2, b2, w3, b3, *, batch_tile=1024,
                 out_dtype=jnp.bfloat16, return_padded=False):
    """Fused GNet forward.  Expects params already run through prepare_params.

    If return_padded=True, returns the raw (Bp, 896) kernel output so a
    downstream consumer can fuse the slice (avoids an extra HBM pass)."""
    B = x.shape[0]
    compute_dtype = w1.dtype

    # Batch tile: multiple of 16 rows (bf16 sublane packing); pad B to it.
    batch_tile = max(16, _round_up(batch_tile, 16))
    tile = min(batch_tile, _round_up(B, 16))
    Bp = _round_up(B, tile)
    # Ensure >=2 grid steps when the batch permits, so "parallel" batch tiles
    # can be sharded across both TensorCores on v7x.
    if Bp // tile < 2 and Bp >= 32:
        tile = _round_up((Bp + 1) // 2, 16)
        Bp = _round_up(B, tile)

    xc = x.astype(compute_dtype)
    if Bp != B:
        xc = jnp.pad(xc, ((0, Bp - B), (0, 0)))

    grid = (Bp // tile,)

    # Advisory cost estimate for XLA's scheduler.
    itemsize_c = jnp.dtype(compute_dtype).itemsize
    itemsize_o = jnp.dtype(out_dtype).itemsize
    flops = 2 * Bp * (IN_DIM * H1_DIM + H1_DIM * H2_DIM + H2_DIM * OUT_PAD)
    bytes_accessed = (
        Bp * IN_DIM * itemsize_c                                               # x
        + (IN_DIM * H1_DIM + H1_DIM * H2_DIM + H2_DIM * OUT_PAD) * itemsize_c  # weights
        + (H1_DIM + H2_DIM + OUT_PAD) * 4                                      # biases (f32)
        + Bp * OUT_PAD * itemsize_o                                            # output
    )

    full = lambda i: (0, 0)       # weights/biases: resident, same block every step
    batch_blk = lambda i: (i, 0)  # activations: tiled along the batch

    out = pl.pallas_call(
        gnet_kernel,
        out_shape=jax.ShapeDtypeStruct((Bp, OUT_PAD), out_dtype),
        grid_spec=pltpu.PrefetchScalarGridSpec(
            num_scalar_prefetch=0,
            grid=grid,
            in_specs=[
                pl.BlockSpec((tile, IN_DIM), batch_blk),   # x   (bf16)
                pl.BlockSpec((IN_DIM, H1_DIM), full),      # w1  (bf16)
                pl.BlockSpec((1, H1_DIM), full),           # b1  (f32)
                pl.BlockSpec((H1_DIM, H2_DIM), full),      # w2  (bf16)
                pl.BlockSpec((1, H2_DIM), full),           # b2  (f32)
                pl.BlockSpec((H2_DIM, OUT_PAD), full),     # w3  (bf16, padded)
                pl.BlockSpec((1, OUT_PAD), full),          # b3  (f32, padded)
            ],
            out_specs=pl.BlockSpec((tile, OUT_PAD), batch_blk),
        ),
        compiler_params=pltpu.CompilerParams(
            # Batch tiles are independent -> shard across TCs on v7x.
            dimension_semantics=("parallel",),
            # Explicit limit: large tiles also fit v5e's 16 MiB scoped default.
            vmem_limit_bytes=32 * 1024 * 1024,
        ),
        cost_estimate=pl.CostEstimate(
            flops=flops, transcendentals=0, bytes_accessed=bytes_accessed),
    )(xc, w1, b1, w2, b2, w3, b3)

    if return_padded:
        return out  # (Bp, OUT_PAD); caller slices [:B, :OUT_DIM] and fuses it
    return out[:B, :OUT_DIM]


def init_params(key):
    """Deterministic init mimicking PyTorch's default Linear init:
    U(-1/sqrt(fan_in), 1/sqrt(fan_in)) for both weights and biases."""
    ks = jax.random.split(key, 6)

    def linear(kw, kb, fan_in, fan_out):
        bound = 1.0 / jnp.sqrt(fan_in)
        w = jax.random.uniform(kw, (fan_in, fan_out), jnp.float32, -bound, bound)
        b = jax.random.uniform(kb, (1, fan_out), jnp.float32, -bound, bound)
        return w, b

    w1, b1 = linear(ks[0], ks[1], IN_DIM, H1_DIM)
    w2, b2 = linear(ks[2], ks[3], H1_DIM, H2_DIM)
    w3, b3 = linear(ks[4], ks[5], H2_DIM, OUT_DIM)
    return w1, b1, w2, b2, w3, b3


def gnet_reference_f32(x, w1, b1, w2, b2, w3, b3):
    """Pure f32 reference matching the PyTorch module exactly."""
    h1 = _leaky_relu(x @ w1 + b1)
    h2 = _leaky_relu(h1 @ w2 + b2)
    return h2 @ w3 + b3


def gnet_reference_mixed(x, w1, b1, w2, b2, w3, b3, compute_dtype=jnp.bfloat16):
    """Reference with the same bf16-operand / f32-accumulate scheme as the kernel."""
    cd = compute_dtype
    h1 = _leaky_relu(
        jnp.dot(x.astype(cd), w1.astype(cd), preferred_element_type=jnp.float32) + b1)
    h2 = _leaky_relu(
        jnp.dot(h1.astype(cd), w2.astype(cd), preferred_element_type=jnp.float32) + b2)
    return jnp.dot(h2.astype(cd), w3.astype(cd),
                   preferred_element_type=jnp.float32) + b3


if __name__ == "__main__":
    key = jax.random.PRNGKey(0)
    k_x, k_p = jax.random.split(key)

    batch = 8  # small demo shape; kernel handles arbitrary B (pads to tile)
    x = jax.random.normal(k_x, (batch, IN_DIM), jnp.float32)
    raw_params = init_params(k_p)

    # One-time parameter preparation (bf16 cast + lane-dense padding), reused
    # across forward calls.
    params = prepare_params(*raw_params)

    out = gnet_forward(x, *params)
    out = jax.block_until_ready(out)
    assert out.shape == (batch, OUT_DIM)
    assert out.dtype == jnp.bfloat16

    out_f32 = out.astype(jnp.float32)

    # Matched-precision check (same bf16 operands / f32 accumulation / bf16 out)
    # -- this is the real correctness gate.
    ref_mixed = gnet_reference_mixed(x, *raw_params)
    ref_mixed_bf16 = ref_mixed.astype(jnp.bfloat16).astype(jnp.float32)
    assert jnp.allclose(out_f32, ref_mixed_bf16, atol=2e-2, rtol=2e-2)

    # Sanity check against the exact f32 PyTorch-equivalent forward
    # (loose tolerance: bf16 operands/output are an intentional perf trade-off).
    ref_f32 = gnet_reference_f32(x, *raw_params)
    assert jnp.allclose(out_f32, ref_f32, atol=1e-1, rtol=1e-1)

    print("KERNEL_OK")
</pallas_src>

<mosaic_0001>
module attributes {stable_mosaic.version = 11 : i64} {
  func.func @gnet_kernel(%arg0: i32, %arg1: memref<16x128xbf16, #tpu.memory_space<vmem>>, %arg2: memref<128x256xbf16, #tpu.memory_space<vmem>>, %arg3: memref<1x256xf32, #tpu.memory_space<vmem>>, %arg4: memref<256x512xbf16, #tpu.memory_space<vmem>>, %arg5: memref<1x512xf32, #tpu.memory_space<vmem>>, %arg6: memref<512x896xbf16, #tpu.memory_space<vmem>>, %arg7: memref<1x896xf32, #tpu.memory_space<vmem>>, %arg8: memref<16x896xbf16, #tpu.memory_space<vmem>>) attributes {dimension_semantics = [#tpu.dimension_semantics<parallel>], iteration_bounds = array<i64: 1>, scalar_prefetch = 0 : i64, scratch_operands = 0 : i64, tpu.core_type = #tpu.core_type<tc>, window_params = [{transform_indices = @transform_0, window_bounds = array<i64: 16, 128>}, {pipeline_mode = #tpu.pipeline_mode<synchronous>, transform_indices = @transform_1, window_bounds = array<i64: 128, 256>}, {pipeline_mode = #tpu.pipeline_mode<synchronous>, transform_indices = @transform_2, window_bounds = array<i64: 1, 256>}, {pipeline_mode = #tpu.pipeline_mode<synchronous>, transform_indices = @transform_3, window_bounds = array<i64: 256, 512>}, {pipeline_mode = #tpu.pipeline_mode<synchronous>, transform_indices = @transform_4, window_bounds = array<i64: 1, 512>}, {pipeline_mode = #tpu.pipeline_mode<synchronous>, transform_indices = @transform_5, window_bounds = array<i64: 512, 896>}, {pipeline_mode = #tpu.pipeline_mode<synchronous>, transform_indices = @transform_6, window_bounds = array<i64: 1, 896>}, {transform_indices = @transform_7, window_bounds = array<i64: 16, 896>}]} {
    %c0 = arith.constant 0 : index
    %c0_0 = arith.constant 0 : index
    %0 = vector.load %arg1[%c0, %c0_0] : memref<16x128xbf16, #tpu.memory_space<vmem>>, vector<16x128xbf16>
    %c0_1 = arith.constant 0 : index
    %c0_2 = arith.constant 0 : index
    %1 = vector.load %arg2[%c0_1, %c0_2] : memref<128x256xbf16, #tpu.memory_space<vmem>>, vector<128x256xbf16>
    %cst = arith.constant dense<0.000000e+00> : vector<16x256xf32>
    %2 = tpu.matmul %0, %1, %cst {dimension_numbers = #tpu.dot_dimension_numbers<[1], [0], [0], [1], [0, 0, 1, 1], [], []>} : vector<16x128xbf16>, vector<128x256xbf16>, vector<16x256xf32> -> vector<16x256xf32>
    %c0_3 = arith.constant 0 : index
    %c0_4 = arith.constant 0 : index
    %3 = vector.load %arg3[%c0_3, %c0_4] : memref<1x256xf32, #tpu.memory_space<vmem>>, vector<1x256xf32>
    %4 = vector.broadcast %3 : vector<1x256xf32> to vector<16x256xf32>
    %5 = arith.addf %2, %4 : vector<16x256xf32>
    %cst_5 = arith.constant 0.000000e+00 : f32
    %6 = vector.broadcast %cst_5 : f32 to vector<16x256xf32>
    %7 = arith.cmpf ogt, %5, %6 : vector<16x256xf32>
    %cst_6 = arith.constant 0.00999999977 : f32
    %8 = vector.broadcast %cst_6 : f32 to vector<16x256xf32>
    %9 = arith.mulf %8, %5 : vector<16x256xf32>
    %10 = arith.select %7, %5, %9 : vector<16x256xi1>, vector<16x256xf32>
    %11 = arith.truncf %10 : vector<16x256xf32> to vector<16x256xbf16>
    %c0_7 = arith.constant 0 : index
    %c0_8 = arith.constant 0 : index
    %12 = vector.load %arg4[%c0_7, %c0_8] : memref<256x512xbf16, #tpu.memory_space<vmem>>, vector<256x512xbf16>
    %cst_9 = arith.constant dense<0.000000e+00> : vector<16x512xf32>
    %13 = tpu.matmul %11, %12, %cst_9 {dimension_numbers = #tpu.dot_dimension_numbers<[1], [0], [0], [1], [0, 0, 1, 1], [], []>} : vector<16x256xbf16>, vector<256x512xbf16>, vector<16x512xf32> -> vector<16x512xf32>
    %c0_10 = arith.constant 0 : index
    %c0_11 = arith.constant 0 : index
    %14 = vector.load %arg5[%c0_10, %c0_11] : memref<1x512xf32, #tpu.memory_space<vmem>>, vector<1x512xf32>
    %15 = vector.broadcast %14 : vector<1x512xf32> to vector<16x512xf32>
    %16 = arith.addf %13, %15 : vector<16x512xf32>
    %cst_12 = arith.constant 0.000000e+00 : f32
    %17 = vector.broadcast %cst_12 : f32 to vector<16x512xf32>
    %18 = arith.cmpf ogt, %16, %17 : vector<16x512xf32>
    %cst_13 = arith.constant 0.00999999977 : f32
    %19 = vector.broadcast %cst_13 : f32 to vector<16x512xf32>
    %20 = arith.mulf %19, %16 : vector<16x512xf32>
    %21 = arith.select %18, %16, %20 : vector<16x512xi1>, vector<16x512xf32>
    %22 = arith.truncf %21 : vector<16x512xf32> to vector<16x512xbf16>
    %c0_14 = arith.constant 0 : index
    %c0_15 = arith.constant 0 : index
    %23 = vector.load %arg6[%c0_14, %c0_15] : memref<512x896xbf16, #tpu.memory_space<vmem>>, vector<512x896xbf16>
    %cst_16 = arith.constant dense<0.000000e+00> : vector<16x896xf32>
    %24 = tpu.matmul %22, %23, %cst_16 {dimension_numbers = #tpu.dot_dimension_numbers<[1], [0], [0], [1], [0, 0, 1, 1], [], []>} : vector<16x512xbf16>, vector<512x896xbf16>, vector<16x896xf32> -> vector<16x896xf32>
    %c0_17 = arith.constant 0 : index
    %c0_18 = arith.constant 0 : index
    %25 = vector.load %arg7[%c0_17, %c0_18] : memref<1x896xf32, #tpu.memory_space<vmem>>, vector<1x896xf32>
    %26 = vector.broadcast %25 : vector<1x896xf32> to vector<16x896xf32>
    %27 = arith.addf %24, %26 : vector<16x896xf32>
    %28 = arith.truncf %27 : vector<16x896xf32> to vector<16x896xbf16>
    %c0_19 = arith.constant 0 : index
    %c0_20 = arith.constant 0 : index
    %29 = vector.load %arg8[%c0_19, %c0_20] : memref<16x896xbf16, #tpu.memory_space<vmem>>, vector<16x896xbf16>
    tpu.vector_store %arg8[%c0_19, %c0_20], %28 {strides = array<i32>} : memref<16x896xbf16, #tpu.memory_space<vmem>>, vector<16x896xbf16>,
    return
  }
  func.func @transform_0(%arg0: i32) -> (i32, i32) {
    %c0_i32 = arith.constant 0 : i32
    %c0_i32_0 = arith.constant 0 : i32
    return %arg0, %c0_i32 : i32, i32
  }
  func.func @transform_1(%arg0: i32) -> (i32, i32) {
    %c0_i32 = arith.constant 0 : i32
    %c0_i32_0 = arith.constant 0 : i32
    %c0_i32_1 = arith.constant 0 : i32
    return %c0_i32, %c0_i32_0 : i32, i32
  }
  func.func @transform_2(%arg0: i32) -> (i32, i32) {
    %c0_i32 = arith.constant 0 : i32
    %c0_i32_0 = arith.constant 0 : i32
    %c0_i32_1 = arith.constant 0 : i32
    return %c0_i32, %c0_i32_0 : i32, i32
  }
  func.func @transform_3(%arg0: i32) -> (i32, i32) {
    %c0_i32 = arith.constant 0 : i32
    %c0_i32_0 = arith.constant 0 : i32
    %c0_i32_1 = arith.constant 0 : i32
    return %c0_i32, %c0_i32_0 : i32, i32
  }
  func.func @transform_4(%arg0: i32) -> (i32, i32) {
    %c0_i32 = arith.constant 0 : i32
    %c0_i32_0 = arith.constant 0 : i32
    %c0_i32_1 = arith.constant 0 : i32
    return %c0_i32, %c0_i32_0 : i32, i32
  }
  func.func @transform_5(%arg0: i32) -> (i32, i32) {
    %c0_i32 = arith.constant 0 : i32
    %c0_i32_0 = arith.constant 0 : i32
    %c0_i32_1 = arith.constant 0 : i32
    return %c0_i32, %c0_i32_0 : i32, i32
  }
  func.func @transform_6(%arg0: i32) -> (i32, i32) {
    %c0_i32 = arith.constant 0 : i32
    %c0_i32_0 = arith.constant 0 : i32
    %c0_i32_1 = arith.constant 0 : i32
    return %c0_i32, %c0_i32_0 : i32, i32
  }
  func.func @transform_7(%arg0: i32) -> (i32, i32) {
    %c0_i32 = arith.constant 0 : i32
    %c0_i32_0 = arith.constant 0 : i32
    return %arg0, %c0_i32 : i32, i32
  }
}

</mosaic_0001>

<llo_original>
// kernel: gnet_forward.1
$region0: #{gnet_forward.1}
  #allocation0 [shape = 'u32[]', space=smem, size = 0x4, offset = 0x4, fixed_abs, tag = 'smem constant byte address 0x4 - core index']
  #allocation1 [shape = 'u32[144,128]{1,0:T(1,128)}', space=vmem, size = 0x12000, scoped, tag = 'internal scratch']
  %s0 = inlined_call_operand.vmem [shape: bf16[16,128], index: 0, kind: input, shape index: {}]
  %s1 = inlined_call_operand.hbm [shape: bf16[128,256], index: 1, kind: input, shape index: {}]
  %s2 = inlined_call_operand.vmem [shape: f32[1,256], index: 2, kind: input, shape index: {}]
  %s3 = inlined_call_operand.hbm [shape: bf16[256,512], index: 3, kind: input, shape index: {}]
  %s4 = inlined_call_operand.vmem [shape: f32[1,512], index: 4, kind: input, shape index: {}]
  %s5 = inlined_call_operand.hbm [shape: bf16[512,896], index: 5, kind: input, shape index: {}]
  %s6 = inlined_call_operand.vmem [shape: f32[1,896], index: 6, kind: input, shape index: {}]
  %s7 = inlined_call_operand.vmem [shape: bf16[16,896], index: 7, kind: output, shape index: {}]
  %s8 = sld [smem:[#allocation0]]
  $region50: #{gnet_forward.1} parent=0
    _
  %s10 = ssub.s32 1, %s8
  %s11 = scalar_select 0, %s10, %s8
  $region1: #{gnet_forward.1} parent=0
    #allocation2 [shape = 'u8[65536]{0}', space=vmem, size = 0x10000, scoped, tag = 'input window, operand 1, single buffered']
    #allocation3 [shape = 's32[1]{0}', space=sflag, size = 0x4, scoped, tag = 'scoped memory for gnet_forward.1']
    #allocation4 [shape = 'u8[262144]{0}', space=vmem, size = 0x40000, scoped, tag = 'input window, operand 3, single buffered']
    #allocation5 [shape = 's32[1]{0}', space=sflag, size = 0x4, scoped, tag = 'scoped memory for gnet_forward.1']
    #allocation6 [shape = 'u8[917504]{0}', space=vmem, size = 0xe0000, scoped, tag = 'input window, operand 5, single buffered']
    %12 = vsyncpa [#allocation3], 0
    %13 = vsyncpa [#allocation5], 0
    // Predicated region
    $region2: #{gnet_forward.1} parent=1 // pred_check
      _
    $region3: #{gnet_forward.1} parent=1 // pred_check_branch
      %15 = sbr.rel (0) target = $region5
    $region4: #{gnet_forward.1} parent=1 // pred_region
      _
    $region5: #{gnet_forward.1} parent=1 // pred_fallthru
      _
    // Predicated region
    $region6: #{gnet_forward.1} parent=1 // pred_check
      _
    $region7: #{gnet_forward.1} parent=1 // pred_check_branch
      %17 = sbr.rel (0) target = $region9
    $region8: #{gnet_forward.1} parent=1 // pred_region
      %s19 = ssub.s32 2048, 2048
      %20 = vsyncadd [#allocation3], %s19
      %s21 = sshll.u32 [#allocation2], 4
      %s22 = int_to_ptr.vmem [resolvable:$true] %s21
      %27 = dma.hbm_to_vmem [thread:$0]  %s1, 2048, %s22, [#allocation3], 128, 128, 8
    $region9: #{gnet_forward.1} parent=1 // pred_fallthru
      _
    // Predicated region
    $region10: #{gnet_forward.1} parent=1 // pred_check
      _
    $region11: #{gnet_forward.1} parent=1 // pred_check_branch
      %29 = sbr.rel (0) target = $region13
    $region12: #{gnet_forward.1} parent=1 // pred_region
      _
    $region13: #{gnet_forward.1} parent=1 // pred_fallthru
      _
    // Predicated region
    $region14: #{gnet_forward.1} parent=1 // pred_check
      _
    $region15: #{gnet_forward.1} parent=1 // pred_check_branch
      %31 = sbr.rel (0) target = $region17
    $region16: #{gnet_forward.1} parent=1 // pred_region
      %s33 = ssub.s32 8192, 8192
      %34 = vsyncadd [#allocation5], %s33
      %s35 = sshll.u32 [#allocation4], 4
      %s36 = int_to_ptr.vmem [resolvable:$true] %s35
      %41 = dma.hbm_to_vmem [thread:$0]  %s3, 8192, %s36, [#allocation5], 256, 256, 16
    $region17: #{gnet_forward.1} parent=1 // pred_fallthru
      _
    // Predicated region
    $region18: #{gnet_forward.1} parent=1 // pred_check
      _
    $region19: #{gnet_forward.1} parent=1 // pred_check_branch
      %43 = sbr.rel (0) target = $region21
    $region20: #{gnet_forward.1} parent=1 // pred_region
      _
    $region21: #{gnet_forward.1} parent=1 // pred_fallthru
      _
    // Predicated region
    $region22: #{gnet_forward.1} parent=1 // pred_check
      _
    $region23: #{gnet_forward.1} parent=1 // pred_check_branch
      %45 = sbr.rel (0) target = $region25
    $region24: #{gnet_forward.1} parent=1 // pred_region
      %s47 = ssub.s32 28672, 28672
      %48 = vsyncadd [#allocation5], %s47
      %s49 = sshll.u32 [#allocation6], 4
      %s50 = int_to_ptr.vmem [resolvable:$true] %s49
      %55 = dma.hbm_to_vmem [thread:$0]  %s5, 28672, %s50, [#allocation5], 448, 448, 28
    $region25: #{gnet_forward.1} parent=1 // pred_fallthru
      _
    // Predicated region
    $region26: #{gnet_forward.1} parent=1 // pred_check
      _
    $region27: #{gnet_forward.1} parent=1 // pred_check_branch
      %57 = sbr.rel (0) target = $region29
    $region28: #{gnet_forward.1} parent=1 // pred_region
      _
    $region29: #{gnet_forward.1} parent=1 // pred_fallthru
      _
    // Predicated region
    $region30: #{gnet_forward.1} parent=1 // pred_check
      _
    $region31: #{gnet_forward.1} parent=1 // pred_check_branch
      %59 = sbr.rel (0) target = $region33
    $region32: #{gnet_forward.1} parent=1 // pred_region
      %60 = dma.done [#allocation3], 2048
    $region33: #{gnet_forward.1} parent=1 // pred_fallthru
      _
    // Predicated region
    $region34: #{gnet_forward.1} parent=1 // pred_check
      _
    $region35: #{gnet_forward.1} parent=1 // pred_check_branch
      %62 = sbr.rel (0) target = $region37
    $region36: #{gnet_forward.1} parent=1 // pred_region
      %63 = dma.done [#allocation5], 8192
    $region37: #{gnet_forward.1} parent=1 // pred_fallthru
      _
    // Predicated region
    $region38: #{gnet_forward.1} parent=1 // pred_check
      _
    $region39: #{gnet_forward.1} parent=1 // pred_check_branch
      %65 = sbr.rel (0) target = $region41
    $region40: #{gnet_forward.1} parent=1 // pred_region
      %66 = dma.done [#allocation5], 28672
    $region41: #{gnet_forward.1} parent=1 // pred_fallthru
      _
    %v68 = vld [vmem:[%s0] sm:$0xf]
    %v69 = vld [vmem:[%s0 + $0x4] sm:$0xf]
    %v70 = vld [vmem:[#allocation2] sm:$0xff]
    %v71 = vld [vmem:[#allocation2 + $0x8] sm:$0xff]
    %v72 = vld [vmem:[#allocation2 + $0x10] sm:$0xff]
    %v73 = vld [vmem:[#allocation2 + $0x18] sm:$0xff]
    %v74 = vld [vmem:[#allocation2 + $0x20] sm:$0xff]
    %v75 = vld [vmem:[#allocation2 + $0x28] sm:$0xff]
    %v76 = vld [vmem:[#allocation2 + $0x30] sm:$0xff]
    %v77 = vld [vmem:[#allocation2 + $0x38] sm:$0xff]
    %v78 = vld [vmem:[#allocation2 + $0x40] sm:$0xff]
    %v79 = vld [vmem:[#allocation2 + $0x48] sm:$0xff]
    %v80 = vld [vmem:[#allocation2 + $0x50] sm:$0xff]
    %v81 = vld [vmem:[#allocation2 + $0x58] sm:$0xff]
    %v82 = vld [vmem:[#allocation2 + $0x60] sm:$0xff]
    %v83 = vld [vmem:[#allocation2 + $0x68] sm:$0xff]
    %v84 = vld [vmem:[#allocation2 + $0x70] sm:$0xff]
    %v85 = vld [vmem:[#allocation2 + $0x78] sm:$0xff]
    %v86 = vld [vmem:[%s2] sm:$0x3]
    %v88 = vlaneseq
    %v89 = vshrl.u32 %v88, 7
    %v90 = vsub.s32 0, %v89
    %v91 = vrot.slane %v86, %v90
    %v92 = vlaneseq
    %v93 = vshrl.u32 %v92, 7
    %v94 = vsub.s32 1, %v93
    %v95 = vrot.slane %v86, %v94
    %v100 = vunpack.c.l.b16 %v68
    %v101 = vunpack.c.l.b16 %v69
    %v102 = vpack.c.b16 %v101, %v100
    %v120 = vunpack.c.l.b16 %v70
    %v121 = vunpack.c.h.b16 %v70
    %v122 = vunpack.c.l.b16 %v71
    %v123 = vunpack.c.h.b16 %v71
    %v124 = vunpack.c.l.b16 %v72
    %v125 = vunpack.c.h.b16 %v72
    %v126 = vunpack.c.l.b16 %v73
    %v127 = vunpack.c.h.b16 %v73
    %v128 = vunpack.c.l.b16 %v74
    %v129 = vunpack.c.h.b16 %v74
    %v130 = vunpack.c.l.b16 %v75
    %v131 = vunpack.c.h.b16 %v75
    %v132 = vunpack.c.l.b16 %v76
    %v133 = vunpack.c.h.b16 %v76
    %v134 = vunpack.c.l.b16 %v77
    %v135 = vunpack.c.h.b16 %v77
    %v136 = vunpack.c.l.b16 %v78
    %v137 = vunpack.c.h.b16 %v78
    %v138 = vunpack.c.l.b16 %v79
    %v139 = vunpack.c.h.b16 %v79
    %v140 = vunpack.c.l.b16 %v80
    %v141 = vunpack.c.h.b16 %v80
    %v142 = vunpack.c.l.b16 %v81
    %v143 = vunpack.c.h.b16 %v81
    %v144 = vunpack.c.l.b16 %v82
    %v145 = vunpack.c.h.b16 %v82
    %v146 = vunpack.c.l.b16 %v83
    %v147 = vunpack.c.h.b16 %v83
    %v148 = vunpack.c.l.b16 %v84
    %v149 = vunpack.c.h.b16 %v84
    %v150 = vunpack.c.l.b16 %v85
    %v151 = vunpack.c.h.b16 %v85
    %v152 = vpack.c.b16 %v122, %v120
    %v153 = vpack.c.b16 %v123, %v121
    %v154 = vpack.c.b16 %v126, %v124
    %v155 = vpack.c.b16 %v127, %v125
    %v156 = vpack.c.b16 %v130, %v128
    %v157 = vpack.c.b16 %v131, %v129
    %v158 = vpack.c.b16 %v134, %v132
    %v159 = vpack.c.b16 %v135, %v133
    %v160 = vpack.c.b16 %v138, %v136
    %v161 = vpack.c.b16 %v139, %v137
    %v162 = vpack.c.b16 %v142, %v140
    %v163 = vpack.c.b16 %v143, %v141
    %v164 = vpack.c.b16 %v146, %v144
    %v165 = vpack.c.b16 %v147, %v145
    %v166 = vpack.c.b16 %v150, %v148
    %v167 = vpack.c.b16 %v151, %v149
    %184 = vmatprep.subr.bf16.mxu0 %v153
    %185 = vmatpush1.bf16.msra.mxu0 %v152
    %186 = vmatprep.subr.bf16.mxu0 %v155
    %187 = vmatpush1.bf16.msra.mxu0 %v154
    %188 = vmatprep.subr.bf16.mxu0 %v157
    %189 = vmatpush1.bf16.msra.mxu0 %v156
    %190 = vmatprep.subr.bf16.mxu0 %v159
    %191 = vmatpush1.bf16.msra.mxu0 %v158
    %192 = vmatprep.subr.bf16.mxu0 %v161
    %193 = vmatpush1.bf16.msra.mxu0 %v160
    %194 = vmatprep.subr.bf16.mxu0 %v163
    %195 = vmatpush1.bf16.msra.mxu0 %v162
    %196 = vmatprep.subr.bf16.mxu0 %v165
    %197 = vmatpush1.bf16.msra.mxu0 %v164
    %198 = vmatprep.subr.bf16.mxu0 %v167
    %199 = vmatpush1.bf16.msra.mxu0 %v166
    %200 = vmatprep.subr.bf16.mxu0 0
    %201 = vmatpush1.bf16.msra.mxu0 0
    %202 = vmatprep.subr.bf16.mxu0 0
    %203 = vmatpush1.bf16.msra.mxu0 0
    %204 = vmatprep.subr.bf16.mxu0 0
    %205 = vmatpush1.bf16.msra.mxu0 0
    %206 = vmatprep.subr.bf16.mxu0 0
    %207 = vmatpush1.bf16.msra.mxu0 0
    %208 = vmatprep.subr.bf16.mxu0 0
    %209 = vmatpush1.bf16.msra.mxu0 0
    %210 = vmatprep.subr.bf16.mxu0 0
    %211 = vmatpush1.bf16.msra.mxu0 0
    %212 = vmatprep.subr.bf16.mxu0 0
    %213 = vmatpush1.bf16.msra.mxu0 0
    %214 = vmatprep.subr.bf16.mxu0 0
    %215 = vmatpush1.bf16.msra.mxu0 0
    %216 = vmatprep.mubr.bf16.mxu0 0
    %217 = vmatmul.mubr.bf16.gmra.mrb[0].mxu0 %v102
    %v218 = vpop.f32.mrb[0].mxu0
    %v219 = vadd.f32 %v91, %v218
    %v220 = vpop.f32.mrb[0].mxu0
    %v221 = vadd.f32 %v95, %v220
    %v222 = vpop.f32.mrb[0].mxu0
    %v223 = vadd.f32 %v91, %v222
    %v224 = vpop.f32.mrb[0].mxu0
    %v225 = vadd.f32 %v95, %v224
    %226 = vdwg.mxu0
    %vm227 = vcmp.gt.f32.partialorder %v219, 0.0
    %vm228 = vcmp.gt.f32.partialorder %v221, 0.0
    %vm229 = vcmp.gt.f32.partialorder %v223, 0.0
    %vm230 = vcmp.gt.f32.partialorder %v225, 0.0
    %v231 = vmul.f32 %v219, 0.01
    %v232 = vmul.f32 %v221, 0.01
    %v233 = vmul.f32 %v223, 0.01
    %v234 = vmul.f32 %v225, 0.01
    %v235 = vsel %vm227, %v219, %v231
    %v236 = vsel %vm228, %v221, %v232
    %v237 = vsel %vm229, %v223, %v233
    %v238 = vsel %vm230, %v225, %v234
    %v239 = vpack.c.bf16 %v237, %v235
    %v240 = vpack.c.bf16 %v238, %v236
    %v241 = vld [vmem:[#allocation4] sm:$0xff]
    %v242 = vld [vmem:[#allocation4 + $0x8] sm:$0xff]
    %v243 = vld [vmem:[#allocation4 + $0x10] sm:$0xff]
    %v244 = vld [vmem:[#allocation4 + $0x18] sm:$0xff]
    %v245 = vld [vmem:[#allocation4 + $0x20] sm:$0xff]
    %v246 = vld [vmem:[#allocation4 + $0x28] sm:$0xff]
    %v247 = vld [vmem:[#allocation4 + $0x30] sm:$0xff]
    %v248 = vld [vmem:[#allocation4 + $0x38] sm:$0xff]
    %v249 = vld [vmem:[#allocation4 + $0x40] sm:$0xff]
    %v250 = vld [vmem:[#allocation4 + $0x48] sm:$0xff]
    %v251 = vld [vmem:[#allocation4 + $0x50] sm:$0xff]
    %v252 = vld [vmem:[#allocation4 + $0x58] sm:$0xff]
    %v253 = vld [vmem:[#allocation4 + $0x60] sm:$0xff]
    %v254 = vld [vmem:[#allocation4 + $0x68] sm:$0xff]
    %v255 = vld [vmem:[#allocation4 + $0x70] sm:$0xff]
    %v256 = vld [vmem:[#allocation4 + $0x78] sm:$0xff]
    %v257 = vld [vmem:[#allocation4 + $0x80] sm:$0xff]
    %v258 = vld [vmem:[#allocation4 + $0x88] sm:$0xff]
    %v259 = vld [vmem:[#allocation4 + $0x90] sm:$0xff]
    %v260 = vld [vmem:[#allocation4 + $0x98] sm:$0xff]
    %v261 = vld [vmem:[#allocation4 + $0xa0] sm:$0xff]
    %v262 = vld [vmem:[#allocation4 + $0xa8] sm:$0xff]
    %v263 = vld [vmem:[#allocation4 + $0xb0] sm:$0xff]
    %v264 = vld [vmem:[#allocation4 + $0xb8] sm:$0xff]
    %v265 = vld [vmem:[#allocation4 + $0xc0] sm:$0xff]
    %v266 = vld [vmem:[#allocation4 + $0xc8] sm:$0xff]
    %v267 = vld [vmem:[#allocation4 + $0xd0] sm:$0xff]
    %v268 = vld [vmem:[#allocation4 + $0xd8] sm:$0xff]
    %v269 = vld [vmem:[#allocation4 + $0xe0] sm:$0xff]
    %v270 = vld [vmem:[#allocation4 + $0xe8] sm:$0xff]
    %v271 = vld [vmem:[#allocation4 + $0xf0] sm:$0xff]
    %v272 = vld [vmem:[#allocation4 + $0xf8] sm:$0xff]
    %v273 = vld [vmem:[#allocation4 + $0x100] sm:$0xff]
    %v274 = vld [vmem:[#allocation4 + $0x108] sm:$0xff]
    %v275 = vld [vmem:[#allocation4 + $0x110] sm:$0xff]
    %v276 = vld [vmem:[#allocation4 + $0x118] sm:$0xff]
    %v277 = vld [vmem:[#allocation4 + $0x120] sm:$0xff]
    %v278 = vld [vmem:[#allocation4 + $0x128] sm:$0xff]
    %v279 = vld [vmem:[#allocation4 + $0x130] sm:$0xff]
    %v280 = vld [vmem:[#allocation4 + $0x138] sm:$0xff]
    %v281 = vld [vmem:[#allocation4 + $0x140] sm:$0xff]
    %v282 = vld [vmem:[#allocation4 + $0x148] sm:$0xff]
    %v283 = vld [vmem:[#allocation4 + $0x150] sm:$0xff]
    %v284 = vld [vmem:[#allocation4 + $0x158] sm:$0xff]
    %v285 = vld [vmem:[#allocation4 + $0x160] sm:$0xff]
    %v286 = vld [vmem:[#allocation4 + $0x168] sm:$0xff]
    %v287 = vld [vmem:[#allocation4 + $0x170] sm:$0xff]
    %v288 = vld [vmem:[#allocation4 + $0x178] sm:$0xff]
    %v289 = vld [vmem:[#allocation4 + $0x180] sm:$0xff]
    %v290 = vld [vmem:[#allocation4 + $0x188] sm:$0xff]
    %v291 = vld [vmem:[#allocation4 + $0x190] sm:$0xff]
    %v292 = vld [vmem:[#allocation4 + $0x198] sm:$0xff]
    %v293 = vld [vmem:[#allocation4 + $0x1a0] sm:$0xff]
    %v294 = vld [vmem:[#allocation4 + $0x1a8] sm:$0xff]
    %v295 = vld [vmem:[#allocation4 + $0x1b0] sm:$0xff]
    %v296 = vld [vmem:[#allocation4 + $0x1b8] sm:$0xff]
    %v297 = vld [vmem:[#allocation4 + $0x1c0] sm:$0xff]
    %v298 = vld [vmem:[#allocation4 + $0x1c8] sm:$0xff]
    %v299 = vld [vmem:[#allocation4 + $0x1d0] sm:$0xff]
    %v300 = vld [vmem:[#allocation4 + $0x1d8] sm:$0xff]
    %v301 = vld [vmem:[#allocation4 + $0x1e0] sm:$0xff]
    %v302 = vld [vmem:[#allocation4 + $0x1e8] sm:$0xff]
    %v303 = vld [vmem:[#allocation4 + $0x1f0] sm:$0xff]
    %v304 = vld [vmem:[#allocation4 + $0x1f8] sm:$0xff]
    %v305 = vld [vmem:[%s4] sm:$0xf]
    %v307 = vlaneseq
    %v308 = vshrl.u32 %v307, 7
    %v309 = vsub.s32 0, %v308
    %v310 = vrot.slane %v305, %v309
    %v311 = vlaneseq
    %v312 = vshrl.u32 %v311, 7
    %v313 = vsub.s32 1, %v312
    %v314 = vrot.slane %v305, %v313
    %v315 = vlaneseq
    %v316 = vshrl.u32 %v315, 7
    %v317 = vsub.s32 2, %v316
    %v318 = vrot.slane %v305, %v317
    %v319 = vlaneseq
    %v320 = vshrl.u32 %v319, 7
    %v321 = vsub.s32 3, %v320
    %v322 = vrot.slane %v305, %v321
    %v391 = vunpack.c.l.b16 %v241
    %v392 = vunpack.c.h.b16 %v241
    %v393 = vunpack.c.l.b16 %v242
    %v394 = vunpack.c.h.b16 %v242
    %v395 = vunpack.c.l.b16 %v243
    %v396 = vunpack.c.h.b16 %v243
    %v397 = vunpack.c.l.b16 %v244
    %v398 = vunpack.c.h.b16 %v244
    %v399 = vunpack.c.l.b16 %v245
    %v400 = vunpack.c.h.b16 %v245
    %v401 = vunpack.c.l.b16 %v246
    %v402 = vunpack.c.h.b16 %v246
    %v403 = vunpack.c.l.b16 %v247
    %v404 = vunpack.c.h.b16 %v247
    %v405 = vunpack.c.l.b16 %v248
    %v406 = vunpack.c.h.b16 %v248
    %v407 = vunpack.c.l.b16 %v249
    %v408 = vunpack.c.h.b16 %v249
    %v409 = vunpack.c.l.b16 %v250
    %v410 = vunpack.c.h.b16 %v250
    %v411 = vunpack.c.l.b16 %v251
    %v412 = vunpack.c.h.b16 %v251
    %v413 = vunpack.c.l.b16 %v252
    %v414 = vunpack.c.h.b16 %v252
    %v415 = vunpack.c.l.b16 %v253
    %v416 = vunpack.c.h.b16 %v253
    %v417 = vunpack.c.l.b16 %v254
    %v418 = vunpack.c.h.b16 %v254
    %v419 = vunpack.c.l.b16 %v255
    %v420 = vunpack.c.h.b16 %v255
    %v421 = vunpack.c.l.b16 %v256
    %v422 = vunpack.c.h.b16 %v256
    %v423 = vunpack.c.l.b16 %v257
    %v424 = vunpack.c.h.b16 %v257
    %v425 = vunpack.c.l.b16 %v258
    %v426 = vunpack.c.h.b16 %v258
    %v427 = vunpack.c.l.b16 %v259
    %v428 = vunpack.c.h.b16 %v259
    %v429 = vunpack.c.l.b16 %v260
    %v430 = vunpack.c.h.b16 %v260
    %v431 = vunpack.c.l.b16 %v261
    %v432 = vunpack.c.h.b16 %v261
    %v433 = vunpack.c.l.b16 %v262
    %v434 = vunpack.c.h.b16 %v262
    %v435 = vunpack.c.l.b16 %v263
    %v436 = vunpack.c.h.b16 %v263
    %v437 = vunpack.c.l.b16 %v264
    %v438 = vunpack.c.h.b16 %v264
    %v439 = vunpack.c.l.b16 %v265
    %v440 = vunpack.c.h.b16 %v265
    %v441 = vunpack.c.l.b16 %v266
    %v442 = vunpack.c.h.b16 %v266
    %v443 = vunpack.c.l.b16 %v267
    %v444 = vunpack.c.h.b16 %v267
    %v445 = vunpack.c.l.b16 %v268
    %v446 = vunpack.c.h.b16 %v268
    %v447 = vunpack.c.l.b16 %v269
    %v448 = vunpack.c.h.b16 %v269
    %v449 = vunpack.c.l.b16 %v270
    %v450 = vunpack.c.h.b16 %v270
    %v451 = vunpack.c.l.b16 %v271
    %v452 = vunpack.c.h.b16 %v271
    %v453 = vunpack.c.l.b16 %v272
    %v454 = vunpack.c.h.b16 %v272
    %v455 = vunpack.c.l.b16 %v273
    %v456 = vunpack.c.h.b16 %v273
    %v457 = vunpack.c.l.b16 %v274
    %v458 = vunpack.c.h.b16 %v274
    %v459 = vunpack.c.l.b16 %v275
    %v460 = vunpack.c.h.b16 %v275
    %v461 = vunpack.c.l.b16 %v276
    %v462 = vunpack.c.h.b16 %v276
    %v463 = vunpack.c.l.b16 %v277
    %v464 = vunpack.c.h.b16 %v277
    %v465 = vunpack.c.l.b16 %v278
    %v466 = vunpack.c.h.b16 %v278
    %v467 = vunpack.c.l.b16 %v279
    %v468 = vunpack.c.h.b16 %v279
    %v469 = vunpack.c.l.b16 %v280
    %v470 = vunpack.c.h.b16 %v280
    %v471 = vunpack.c.l.b16 %v281
    %v472 = vunpack.c.h.b16 %v281
    %v473 = vunpack.c.l.b16 %v282
    %v474 = vunpack.c.h.b16 %v282
    %v475 = vunpack.c.l.b16 %v283
    %v476 = vunpack.c.h.b16 %v283
    %v477 = vunpack.c.l.b16 %v284
    %v478 = vunpack.c.h.b16 %v284
    %v479 = vunpack.c.l.b16 %v285
    %v480 = vunpack.c.h.b16 %v285
    %v481 = vunpack.c.l.b16 %v286
    %v482 = vunpack.c.h.b16 %v286
    %v483 = vunpack.c.l.b16 %v287
    %v484 = vunpack.c.h.b16 %v287
    %v485 = vunpack.c.l.b16 %v288
    %v486 = vunpack.c.h.b16 %v288
    %v487 = vunpack.c.l.b16 %v289
    %v488 = vunpack.c.h.b16 %v289
    %v489 = vunpack.c.l.b16 %v290
    %v490 = vunpack.c.h.b16 %v290
    %v491 = vunpack.c.l.b16 %v291
    %v492 = vunpack.c.h.b16 %v291
    %v493 = vunpack.c.l.b16 %v292
    %v494 = vunpack.c.h.b16 %v292
    %v495 = vunpack.c.l.b16 %v293
    %v496 = vunpack.c.h.b16 %v293
    %v497 = vunpack.c.l.b16 %v294
    %v498 = vunpack.c.h.b16 %v294
    %v499 = vunpack.c.l.b16 %v295
    %v500 = vunpack.c.h.b16 %v295
    %v501 = vunpack.c.l.b16 %v296
    %v502 = vunpack.c.h.b16 %v296
    %v503 = vunpack.c.l.b16 %v297
    %v504 = vunpack.c.h.b16 %v297
    %v505 = vunpack.c.l.b16 %v298
    %v506 = vunpack.c.h.b16 %v298
    %v507 = vunpack.c.l.b16 %v299
    %v508 = vunpack.c.h.b16 %v299
    %v509 = vunpack.c.l.b16 %v300
    %v510 = vunpack.c.h.b16 %v300
    %v511 = vunpack.c.l.b16 %v301
    %v512 = vunpack.c.h.b16 %v301
    %v513 = vunpack.c.l.b16 %v302
    %v514 = vunpack.c.h.b16 %v302
    %v515 = vunpack.c.l.b16 %v303
    %v516 = vunpack.c.h.b16 %v303
    %v517 = vunpack.c.l.b16 %v304
    %v518 = vunpack.c.h.b16 %v304
    %v519 = vpack.c.b16 %v395, %v391
    %v520 = vpack.c.b16 %v396, %v392
    %v521 = vpack.c.b16 %v397, %v393
    %v522 = vpack.c.b16 %v398, %v394
    %v523 = vpack.c.b16 %v403, %v399
    %v524 = vpack.c.b16 %v404, %v400
    %v525 = vpack.c.b16 %v405, %v401
    %v526 = vpack.c.b16 %v406, %v402
    %v527 = vpack.c.b16 %v411, %v407
    %v528 = vpack.c.b16 %v412, %v408
    %v529 = vpack.c.b16 %v413, %v409
    %v530 = vpack.c.b16 %v414, %v410
    %v531 = vpack.c.b16 %v419, %v415
    %v532 = vpack.c.b16 %v420, %v416
    %v533 = vpack.c.b16 %v421, %v417
    %v534 = vpack.c.b16 %v422, %v418
    %v535 = vpack.c.b16 %v427, %v423
    %v536 = vpack.c.b16 %v428, %v424
    %v537 = vpack.c.b16 %v429, %v425
    %v538 = vpack.c.b16 %v430, %v426
    %v539 = vpack.c.b16 %v435, %v431
    %v540 = vpack.c.b16 %v436, %v432
    %v541 = vpack.c.b16 %v437, %v433
    %v542 = vpack.c.b16 %v438, %v434
    %v543 = vpack.c.b16 %v443, %v439
    %v544 = vpack.c.b16 %v444, %v440
    %v545 = vpack.c.b16 %v445, %v441
    %v546 = vpack.c.b16 %v446, %v442
    %v547 = vpack.c.b16 %v451, %v447
    %v548 = vpack.c.b16 %v452, %v448
    %v549 = vpack.c.b16 %v453, %v449
    %v550 = vpack.c.b16 %v454, %v450
    %v551 = vpack.c.b16 %v459, %v455
    %v552 = vpack.c.b16 %v460, %v456
    %v553 = vpack.c.b16 %v461, %v457
    %v554 = vpack.c.b16 %v462, %v458
    %v555 = vpack.c.b16 %v467, %v463
    %v556 = vpack.c.b16 %v468, %v464
    %v557 = vpack.c.b16 %v469, %v465
    %v558 = vpack.c.b16 %v470, %v466
    %v559 = vpack.c.b16 %v475, %v471
    %v560 = vpack.c.b16 %v476, %v472
    %v561 = vpack.c.b16 %v477, %v473
    %v562 = vpack.c.b16 %v478, %v474
    %v563 = vpack.c.b16 %v483, %v479
    %v564 = vpack.c.b16 %v484, %v480
    %v565 = vpack.c.b16 %v485, %v481
    %v566 = vpack.c.b16 %v486, %v482
    %v567 = vpack.c.b16 %v491, %v487
    %v568 = vpack.c.b16 %v492, %v488
    %v569 = vpack.c.b16 %v493, %v489
    %v570 = vpack.c.b16 %v494, %v490
    %v571 = vpack.c.b16 %v499, %v495
    %v572 = vpack.c.b16 %v500, %v496
    %v573 = vpack.c.b16 %v501, %v497
    %v574 = vpack.c.b16 %v502, %v498
    %v575 = vpack.c.b16 %v507, %v503
    %v576 = vpack.c.b16 %v508, %v504
    %v577 = vpack.c.b16 %v509, %v505
    %v578 = vpack.c.b16 %v510, %v506
    %v579 = vpack.c.b16 %v515, %v511
    %v580 = vpack.c.b16 %v516, %v512
    %v581 = vpack.c.b16 %v517, %v513
    %v582 = vpack.c.b16 %v518, %v514
    %647 = vmatprep.subr.bf16.mxu0 %v520
    %648 = vmatpush1.bf16.msra.mxu0 %v519
    %649 = vmatprep.subr.bf16.mxu0 %v524
    %650 = vmatpush1.bf16.msra.mxu0 %v523
    %651 = vmatprep.subr.bf16.mxu0 %v528
    %652 = vmatpush1.bf16.msra.mxu0 %v527
    %653 = vmatprep.subr.bf16.mxu0 %v532
    %654 = vmatpush1.bf16.msra.mxu0 %v531
    %655 = vmatprep.subr.bf16.mxu0 %v536
    %656 = vmatpush1.bf16.msra.mxu0 %v535
    %657 = vmatprep.subr.bf16.mxu0 %v540
    %658 = vmatpush1.bf16.msra.mxu0 %v539
    %659 = vmatprep.subr.bf16.mxu0 %v544
    %660 = vmatpush1.bf16.msra.mxu0 %v543
    %661 = vmatprep.subr.bf16.mxu0 %v548
    %662 = vmatpush1.bf16.msra.mxu0 %v547
    %663 = vmatprep.subr.bf16.mxu0 %v552
    %664 = vmatpush1.bf16.msra.mxu0 %v551
    %665 = vmatprep.subr.bf16.mxu0 %v556
    %666 = vmatpush1.bf16.msra.mxu0 %v555
    %667 = vmatprep.subr.bf16.mxu0 %v560
    %668 = vmatpush1.bf16.msra.mxu0 %v559
    %669 = vmatprep.subr.bf16.mxu0 %v564
    %670 = vmatpush1.bf16.msra.mxu0 %v563
    %671 = vmatprep.subr.bf16.mxu0 %v568
    %672 = vmatpush1.bf16.msra.mxu0 %v567
    %673 = vmatprep.subr.bf16.mxu0 %v572
    %674 = vmatpush1.bf16.msra.mxu0 %v571
    %675 = vmatprep.subr.bf16.mxu0 %v576
    %676 = vmatpush1.bf16.msra.mxu0 %v575
    %677 = vmatprep.subr.bf16.mxu0 %v580
    %678 = vmatpush1.bf16.msra.mxu0 %v579
    %679 = vmatprep.mubr.bf16.mxu0 %v240
    %680 = vmatmul.mubr.bf16.gmra.mrb[0].mxu0 %v239
    %v681 = vpop.f32.mrb[0].mxu0
    %v682 = vadd.f32 %v310, %v681
    %v683 = vpop.f32.mrb[0].mxu0
    %v684 = vadd.f32 %v314, %v683
    %v685 = vpop.f32.mrb[0].mxu0
    %v686 = vadd.f32 %v310, %v685
    %v687 = vpop.f32.mrb[0].mxu0
    %v688 = vadd.f32 %v314, %v687
    %689 = vdwg.mxu0
    %690 = vmatprep.subr.bf16.mxu0 %v522
    %691 = vmatpush1.bf16.msra.mxu0 %v521
    %692 = vmatprep.subr.bf16.mxu0 %v526
    %693 = vmatpush1.bf16.msra.mxu0 %v525
    %694 = vmatprep.subr.bf16.mxu0 %v530
    %695 = vmatpush1.bf16.msra.mxu0 %v529
    %696 = vmatprep.subr.bf16.mxu0 %v534
    %697 = vmatpush1.bf16.msra.mxu0 %v533
    %698 = vmatprep.subr.bf16.mxu0 %v538
    %699 = vmatpush1.bf16.msra.mxu0 %v537
    %700 = vmatprep.subr.bf16.mxu0 %v542
    %701 = vmatpush1.bf16.msra.mxu0 %v541
    %702 = vmatprep.subr.bf16.mxu0 %v546
    %703 = vmatpush1.bf16.msra.mxu0 %v545
    %704 = vmatprep.subr.bf16.mxu0 %v550
    %705 = vmatpush1.bf16.msra.mxu0 %v549
    %706 = vmatprep.subr.bf16.mxu0 %v554
    %707 = vmatpush1.bf16.msra.mxu0 %v553
    %708 = vmatprep.subr.bf16.mxu0 %v558
    %709 = vmatpush1.bf16.msra.mxu0 %v557
    %710 = vmatprep.subr.bf16.mxu0 %v562
    %711 = vmatpush1.bf16.msra.mxu0 %v561
    %712 = vmatprep.subr.bf16.mxu0 %v566
    %713 = vmatpush1.bf16.msra.mxu0 %v565
    %714 = vmatprep.subr.bf16.mxu0 %v570
    %715 = vmatpush1.bf16.msra.mxu0 %v569
    %716 = vmatprep.subr.bf16.mxu0 %v574
    %717 = vmatpush1.bf16.msra.mxu0 %v573
    %718 = vmatprep.subr.bf16.mxu0 %v578
    %719 = vmatpush1.bf16.msra.mxu0 %v577
    %720 = vmatprep.subr.bf16.mxu0 %v582
    %721 = vmatpush1.bf16.msra.mxu0 %v581
    %722 = vmatprep.mubr.bf16.mxu0 %v240
    %723 = vmatmul.mubr.bf16.gmra.mrb[0].mxu0 %v239
    %v724 = vpop.f32.mrb[0].mxu0
    %v725 = vadd.f32 %v318, %v724
    %v726 = vpop.f32.mrb[0].mxu0
    %v727 = vadd.f32 %v322, %v726
    %v728 = vpop.f32.mrb[0].mxu0
    %v729 = vadd.f32 %v318, %v728
    %v730 = vpop.f32.mrb[0].mxu0
    %v731 = vadd.f32 %v322, %v730
    %732 = vdwg.mxu0
    %vm733 = vcmp.gt.f32.partialorder %v682, 0.0
    %vm734 = vcmp.gt.f32.partialorder %v684, 0.0
    %vm735 = vcmp.gt.f32.partialorder %v725, 0.0
    %vm736 = vcmp.gt.f32.partialorder %v727, 0.0
    %vm737 = vcmp.gt.f32.partialorder %v686, 0.0
    %vm738 = vcmp.gt.f32.partialorder %v688, 0.0
    %vm739 = vcmp.gt.f32.partialorder %v729, 0.0
    %vm740 = vcmp.gt.f32.partialorder %v731, 0.0
    %v741 = vmul.f32 %v682, 0.01
    %v742 = vmul.f32 %v684, 0.01
    %v743 = vmul.f32 %v725, 0.01
    %v744 = vmul.f32 %v727, 0.01
    %v745 = vmul.f32 %v686, 0.01
    %v746 = vmul.f32 %v688, 0.01
    %v747 = vmul.f32 %v729, 0.01
    %v748 = vmul.f32 %v731, 0.01
    %v749 = vsel %vm733, %v682, %v741
    %v750 = vsel %vm734, %v684, %v742
    %v751 = vsel %vm735, %v725, %v743
    %v752 = vsel %vm736, %v727, %v744
    %v753 = vsel %vm737, %v686, %v745
    %v754 = vsel %vm738, %v688, %v746
    %v755 = vsel %vm739, %v729, %v747
    %v756 = vsel %vm740, %v731, %v748
    %v757 = vpack.c.bf16 %v753, %v749
    %v758 = vpack.c.bf16 %v754, %v750
    %v759 = vpack.c.bf16 %v755, %v751
    %v760 = vpack.c.bf16 %v756, %v752
    %v761 = vld [vmem:[#allocation6] sm:$0xff]
    %v762 = vld [vmem:[#allocation6 + $0x8] sm:$0xff]
    %v763 = vld [vmem:[#allocation6 + $0x10] sm:$0xff]
    %v764 = vld [vmem:[#allocation6 + $0x18] sm:$0xf]
    %v765 = vld [vmem:[#allocation6 + $0x1c] sm:$0xff]
    %v766 = vld [vmem:[#allocation6 + $0x24] sm:$0xff]
    %v767 = vld [vmem:[#allocation6 + $0x2c] sm:$0xff]
    %v768 = vld [vmem:[#allocation6 + $0x34] sm:$0xf]
    %v769 = vld [vmem:[#allocation6 + $0x38] sm:$0xff]
    %v770 = vld [vmem:[#allocation6 + $0x40] sm:$0xff]
    %v771 = vld [vmem:[#allocation6 + $0x48] sm:$0xff]
    %v772 = vld [vmem:[#allocation6 + $0x50] sm:$0xf]
    %v773 = vld [vmem:[#allocation6 + $0x54] sm:$0xff]
    %v774 = vld [vmem:[#allocation6 + $0x5c] sm:$0xff]
    %v775 = vld [vmem:[#allocation6 + $0x64] sm:$0xff]
    %v776 = vld [vmem:[#allocation6 + $0x6c] sm:$0xf]
    %v777 = vld [vmem:[#allocation6 + $0x70] sm:$0xff]
    %v778 = vld [vmem:[#allocation6 + $0x78] sm:$0xff]
    %v779 = vld [vmem:[#allocation6 + $0x80] sm:$0xff]
    %v780 = vld [vmem:[#allocation6 + $0x88] sm:$0xf]
    %v781 = vld [vmem:[#allocation6 + $0x8c] sm:$0xff]
    %v782 = vld [vmem:[#allocation6 + $0x94] sm:$0xff]
    %v783 = vld [vmem:[#allocation6 + $0x9c] sm:$0xff]
    %v784 = vld [vmem:[#allocation6 + $0xa4] sm:$0xf]
    %v785 = vld [vmem:[#allocation6 + $0xa8] sm:$0xff]
    %v786 = vld [vmem:[#allocation6 + $0xb0] sm:$0xff]
    %v787 = vld [vmem:[#allocation6 + $0xb8] sm:$0xff]
    %v788 = vld [vmem:[#allocation6 + $0xc0] sm:$0xf]
    %v789 = vld [vmem:[#allocation6 + $0xc4] sm:$0xff]
    %v790 = vld [vmem:[#allocation6 + $0xcc] sm:$0xff]
    %v791 = vld [vmem:[#allocation6 + $0xd4] sm:$0xff]
    %v792 = vld [vmem:[#allocation6 + $0xdc] sm:$0xf]
    %v793 = vld [vmem:[#allocation6 + $0xe0] sm:$0xff]
    %v794 = vld [vmem:[#allocation6 + $0xe8] sm:$0xff]
    %v795 = vld [vmem:[#allocation6 + $0xf0] sm:$0xff]
    %v796 = vld [vmem:[#allocation6 + $0xf8] sm:$0xf]
    %v797 = vld [vmem:[#allocation6 + $0xfc] sm:$0xff]
    %v798 = vld [vmem:[#allocation6 + $0x104] sm:$0xff]
    %v799 = vld [vmem:[#allocation6 + $0x10c] sm:$0xff]
    %v800 = vld [vmem:[#allocation6 + $0x114] sm:$0xf]
    %v801 = vld [vmem:[#allocation6 + $0x118] sm:$0xff]
    %v802 = vld [vmem:[#allocation6 + $0x120] sm:$0xff]
    %v803 = vld [vmem:[#allocation6 + $0x128] sm:$0xff]
    %v804 = vld [vmem:[#allocation6 + $0x130] sm:$0xf]
    %v805 = vld [vmem:[#allocation6 + $0x134] sm:$0xff]
    %v806 = vld [vmem:[#allocation6 + $0x13c] sm:$0xff]
    %v807 = vld [vmem:[#allocation6 + $0x144] sm:$0xff]
    %v808 = vld [vmem:[#allocation6 + $0x14c] sm:$0xf]
    %v809 = vld [vmem:[#allocation6 + $0x150] sm:$0xff]
    %v810 = vld [vmem:[#allocation6 + $0x158] sm:$0xff]
    %v811 = vld [vmem:[#allocation6 + $0x160] sm:$0xff]
    %v812 = vld [vmem:[#allocation6 + $0x168] sm:$0xf]
    %v813 = vld [vmem:[#allocation6 + $0x16c] sm:$0xff]
    %v814 = vld [vmem:[#allocation6 + $0x174] sm:$0xff]
    %v815 = vld [vmem:[#allocation6 + $0x17c] sm:$0xff]
    %v816 = vld [vmem:[#allocation6 + $0x184] sm:$0xf]
    %v817 = vld [vmem:[#allocation6 + $0x188] sm:$0xff]
    %v818 = vld [vmem:[#allocation6 + $0x190] sm:$0xff]
    %v819 = vld [vmem:[#allocation6 + $0x198] sm:$0xff]
    %v820 = vld [vmem:[#allocation6 + $0x1a0] sm:$0xf]
    %v821 = vld [vmem:[#allocation6 + $0x1a4] sm:$0xff]
    %v822 = vld [vmem:[#allocation6 + $0x1ac] sm:$0xff]
    %v823 = vld [vmem:[#allocation6 + $0x1b4] sm:$0xff]
    %v824 = vld [vmem:[#allocation6 + $0x1bc] sm:$0xf]
    %v825 = vld [vmem:[#allocation6 + $0x1c0] sm:$0xff]
    %v826 = vld [vmem:[#allocation6 + $0x1c8] sm:$0xff]
    %v827 = vld [vmem:[#allocation6 + $0x1d0] sm:$0xff]
    %v828 = vld [vmem:[#allocation6 + $0x1d8] sm:$0xf]
    %v829 = vld [vmem:[#allocation6 + $0x1dc] sm:$0xff]
    %v830 = vld [vmem:[#allocation6 + $0x1e4] sm:$0xff]
    %v831 = vld [vmem:[#allocation6 + $0x1ec] sm:$0xff]
    %v832 = vld [vmem:[#allocation6 + $0x1f4] sm:$0xf]
    %v833 = vld [vmem:[#allocation6 + $0x1f8] sm:$0xff]
    %v834 = vld [vmem:[#allocation6 + $0x200] sm:$0xff]
    %v835 = vld [vmem:[#allocation6 + $0x208] sm:$0xff]
    %v836 = vld [vmem:[#allocation6 + $0x210] sm:$0xf]
    %v837 = vld [vmem:[#allocation6 + $0x214] sm:$0xff]
    %v838 = vld [vmem:[#allocation6 + $0x21c] sm:$0xff]
    %v839 = vld [vmem:[#allocation6 + $0x224] sm:$0xff]
    %v840 = vld [vmem:[#allocation6 + $0x22c] sm:$0xf]
    %v841 = vld [vmem:[#allocation6 + $0x230] sm:$0xff]
    %v842 = vld [vmem:[#allocation6 + $0x238] sm:$0xff]
    %v843 = vld [vmem:[#allocation6 + $0x240] sm:$0xff]
    %v844 = vld [vmem:[#allocation6 + $0x248] sm:$0xf]
    %v845 = vld [vmem:[#allocation6 + $0x24c] sm:$0xff]
    %v846 = vld [vmem:[#allocation6 + $0x254] sm:$0xff]
    %v847 = vld [vmem:[#allocation6 + $0x25c] sm:$0xff]
    %v848 = vld [vmem:[#allocation6 + $0x264] sm:$0xf]
    %v849 = vld [vmem:[#allocation6 + $0x268] sm:$0xff]
    %v850 = vld [vmem:[#allocation6 + $0x270] sm:$0xff]
    %v851 = vld [vmem:[#allocation6 + $0x278] sm:$0xff]
    %v852 = vld [vmem:[#allocation6 + $0x280] sm:$0xf]
    %v853 = vld [vmem:[#allocation6 + $0x284] sm:$0xff]
    %v854 = vld [vmem:[#allocation6 + $0x28c] sm:$0xff]
    %v855 = vld [vmem:[#allocation6 + $0x294] sm:$0xff]
    %v856 = vld [vmem:[#allocation6 + $0x29c] sm:$0xf]
    %v857 = vld [vmem:[#allocation6 + $0x2a0] sm:$0xff]
    %v858 = vld [vmem:[#allocation6 + $0x2a8] sm:$0xff]
    %v859 = vld [vmem:[#allocation6 + $0x2b0] sm:$0xff]
    %v860 = vld [vmem:[#allocation6 + $0x2b8] sm:$0xf]
    %v861 = vld [vmem:[#allocation6 + $0x2bc] sm:$0xff]
    %v862 = vld [vmem:[#allocation6 + $0x2c4] sm:$0xff]
    %v863 = vld [vmem:[#allocation6 + $0x2cc] sm:$0xff]
    %v864 = vld [vmem:[#allocation6 + $0x2d4] sm:$0xf]
    %v865 = vld [vmem:[#allocation6 + $0x2d8] sm:$0xff]
    %v866 = vld [vmem:[#allocation6 + $0x2e0] sm:$0xff]
    %v867 = vld [vmem:[#allocation6 + $0x2e8] sm:$0xff]
    %v868 = vld [vmem:[#allocation6 + $0x2f0] sm:$0xf]
    %v869 = vld [vmem:[#allocation6 + $0x2f4] sm:$0xff]
    %v870 = vld [vmem:[#allocation6 + $0x2fc] sm:$0xff]
    %v871 = vld [vmem:[#allocation6 + $0x304] sm:$0xff]
    %v872 = vld [vmem:[#allocation6 + $0x30c] sm:$0xf]
    %v873 = vld [vmem:[#allocation6 + $0x310] sm:$0xff]
    %v874 = vld [vmem:[#allocation6 + $0x318] sm:$0xff]
    %v875 = vld [vmem:[#allocation6 + $0x320] sm:$0xff]
    %v876 = vld [vmem:[#allocation6 + $0x328] sm:$0xf]
    %v877 = vld [vmem:[#allocation6 + $0x32c] sm:$0xff]
    %v878 = vld [vmem:[#allocation6 + $0x334] sm:$0xff]
    %v879 = vld [vmem:[#allocation6 + $0x33c] sm:$0xff]
    %v880 = vld [vmem:[#allocation6 + $0x344] sm:$0xf]
    %v881 = vld [vmem:[#allocation6 + $0x348] sm:$0xff]
    %v882 = vld [vmem:[#allocation6 + $0x350] sm:$0xff]
    %v883 = vld [vmem:[#allocation6 + $0x358] sm:$0xff]
    %v884 = vld [vmem:[#allocation6 + $0x360] sm:$0xf]
    %v885 = vld [vmem:[#allocation6 + $0x364] sm:$0xff]
    %v886 = vld [vmem:[#allocation6 + $0x36c] sm:$0xff]
    %v887 = vld [vmem:[#allocation6 + $0x374] sm:$0xff]
    %v888 = vld [vmem:[#allocation6 + $0x37c] sm:$0xf]
    %v889 = vld [vmem:[#allocation6 + $0x380] sm:$0xff]
    %v890 = vld [vmem:[#allocation6 + $0x388] sm:$0xff]
    %v891 = vld [vmem:[#allocation6 + $0x390] sm:$0xff]
    %v892 = vld [vmem:[#allocation6 + $0x398] sm:$0xf]
    %v893 = vld [vmem:[#allocation6 + $0x39c] sm:$0xff]
    %v894 = vld [vmem:[#allocation6 + $0x3a4] sm:$0xff]
    %v895 = vld [vmem:[#allocation6 + $0x3ac] sm:$0xff]
    %v896 = vld [vmem:[#allocation6 + $0x3b4] sm:$0xf]
    %v897 = vld [vmem:[#allocation6 + $0x3b8] sm:$0xff]
    %v898 = vld [vmem:[#allocation6 + $0x3c0] sm:$0xff]
    %v899 = vld [vmem:[#allocation6 + $0x3c8] sm:$0xff]
    %v900 = vld [vmem:[#allocation6 + $0x3d0] sm:$0xf]
    %v901 = vld [vmem:[#allocation6 + $0x3d4] sm:$0xff]
    %v902 = vld [vmem:[#allocation6 + $0x3dc] sm:$0xff]
    %v903 = vld [vmem:[#allocation6 + $0x3e4] sm:$0xff]
    %v904 = vld [vmem:[#allocation6 + $0x3ec] sm:$0xf]
    %v905 = vld [vmem:[#allocation6 + $0x3f0] sm:$0xff]
    %v906 = vld [vmem:[#allocation6 + $0x3f8] sm:$0xff]
    %v907 = vld [vmem:[#allocation6 + $0x400] sm:$0xff]
    %v908 = vld [vmem:[#allocation6 + $0x408] sm:$0xf]
    %v909 = vld [vmem:[#allocation6 + $0x40c] sm:$0xff]
    %v910 = vld [vmem:[#allocation6 + $0x414] sm:$0xff]
    %v911 = vld [vmem:[#allocation6 + $0x41c] sm:$0xff]
    %v912 = vld [vmem:[#allocation6 + $0x424] sm:$0xf]
    %v913 = vld [vmem:[#allocation6 + $0x428] sm:$0xff]
    %v914 = vld [vmem:[#allocation6 + $0x430] sm:$0xff]
    %v915 = vld [vmem:[#allocation6 + $0x438] sm:$0xff]
    %v916 = vld [vmem:[#allocation6 + $0x440] sm:$0xf]
    %v917 = vld [vmem:[#allocation6 + $0x444] sm:$0xff]
    %v918 = vld [vmem:[#allocation6 + $0x44c] sm:$0xff]
    %v919 = vld [vmem:[#allocation6 + $0x454] sm:$0xff]
    %v920 = vld [vmem:[#allocation6 + $0x45c] sm:$0xf]
    %v921 = vld [vmem:[#allocation6 + $0x460] sm:$0xff]
    %v922 = vld [vmem:[#allocation6 + $0x468] sm:$0xff]
    %v923 = vld [vmem:[#allocation6 + $0x470] sm:$0xff]
    %v924 = vld [vmem:[#allocation6 + $0x478] sm:$0xf]
    %v925 = vld [vmem:[#allocation6 + $0x47c] sm:$0xff]
    %v926 = vld [vmem:[#allocation6 + $0x484] sm:$0xff]
    %v927 = vld [vmem:[#allocation6 + $0x48c] sm:$0xff]
    %v928 = vld [vmem:[#allocation6 + $0x494] sm:$0xf]
    %v929 = vld [vmem:[#allocation6 + $0x498] sm:$0xff]
    %v930 = vld [vmem:[#allocation6 + $0x4a0] sm:$0xff]
    %v931 = vld [vmem:[#allocation6 + $0x4a8] sm:$0xff]
    %v932 = vld [vmem:[#allocation6 + $0x4b0] sm:$0xf]
    %v933 = vld [vmem:[#allocation6 + $0x4b4] sm:$0xff]
    %v934 = vld [vmem:[#allocation6 + $0x4bc] sm:$0xff]
    %v935 = vld [vmem:[#allocation6 + $0x4c4] sm:$0xff]
    %v936 = vld [vmem:[#allocation6 + $0x4cc] sm:$0xf]
    %v937 = vld [vmem:[#allocation6 + $0x4d0] sm:$0xff]
    %v938 = vld [vmem:[#allocation6 + $0x4d8] sm:$0xff]
    %v939 = vld [vmem:[#allocation6 + $0x4e0] sm:$0xff]
    %v940 = vld [vmem:[#allocation6 + $0x4e8] sm:$0xf]
    %v941 = vld [vmem:[#allocation6 + $0x4ec] sm:$0xff]
    %v942 = vld [vmem:[#allocation6 + $0x4f4] sm:$0xff]
    %v943 = vld [vmem:[#allocation6 + $0x4fc] sm:$0xff]
    %v944 = vld [vmem:[#allocation6 + $0x504] sm:$0xf]
    %v945 = vld [vmem:[#allocation6 + $0x508] sm:$0xff]
    %v946 = vld [vmem:[#allocation6 + $0x510] sm:$0xff]
    %v947 = vld [vmem:[#allocation6 + $0x518] sm:$0xff]
    %v948 = vld [vmem:[#allocation6 + $0x520] sm:$0xf]
    %v949 = vld [vmem:[#allocation6 + $0x524] sm:$0xff]
    %v950 = vld [vmem:[#allocation6 + $0x52c] sm:$0xff]
    %v951 = vld [vmem:[#allocation6 + $0x534] sm:$0xff]
    %v952 = vld [vmem:[#allocation6 + $0x53c] sm:$0xf]
    %v953 = vld [vmem:[#allocation6 + $0x540] sm:$0xff]
    %v954 = vld [vmem:[#allocation6 + $0x548] sm:$0xff]
    %v955 = vld [vmem:[#allocation6 + $0x550] sm:$0xff]
    %v956 = vld [vmem:[#allocation6 + $0x558] sm:$0xf]
    %v957 = vld [vmem:[#allocation6 + $0x55c] sm:$0xff]
    %v958 = vld [vmem:[#allocation6 + $0x564] sm:$0xff]
    %v959 = vld [vmem:[#allocation6 + $0x56c] sm:$0xff]
    %v960 = vld [vmem:[#allocation6 + $0x574] sm:$0xf]
    %v961 = vld [vmem:[#allocation6 + $0x578] sm:$0xff]
    %v962 = vld [vmem:[#allocation6 + $0x580] sm:$0xff]
    %v963 = vld [vmem:[#allocation6 + $0x588] sm:$0xff]
    %v964 = vld [vmem:[#allocation6 + $0x590] sm:$0xf]
    %v965 = vld [vmem:[#allocation6 + $0x594] sm:$0xff]
    %v966 = vld [vmem:[#allocation6 + $0x59c] sm:$0xff]
    %v967 = vld [vmem:[#allocation6 + $0x5a4] sm:$0xff]
    %v968 = vld [vmem:[#allocation6 + $0x5ac] sm:$0xf]
    %v969 = vld [vmem:[#allocation6 + $0x5b0] sm:$0xff]
    %v970 = vld [vmem:[#allocation6 + $0x5b8] sm:$0xff]
    %v971 = vld [vmem:[#allocation6 + $0x5c0] sm:$0xff]
    %v972 = vld [vmem:[#allocation6 + $0x5c8] sm:$0xf]
    %v973 = vld [vmem:[#allocation6 + $0x5cc] sm:$0xff]
    %v974 = vld [vmem:[#allocation6 + $0x5d4] sm:$0xff]
    %v975 = vld [vmem:[#allocation6 + $0x5dc] sm:$0xff]
    %v976 = vld [vmem:[#allocation6 + $0x5e4] sm:$0xf]
    %v977 = vld [vmem:[#allocation6 + $0x5e8] sm:$0xff]
    %v978 = vld [vmem:[#allocation6 + $0x5f0] sm:$0xff]
    %v979 = vld [vmem:[#allocation6 + $0x5f8] sm:$0xff]
    %v980 = vld [vmem:[#allocation6 + $0x600] sm:$0xf]
    %v981 = vld [vmem:[#allocation6 + $0x604] sm:$0xff]
    %v982 = vld [vmem:[#allocation6 + $0x60c] sm:$0xff]
    %v983 = vld [vmem:[#allocation6 + $0x614] sm:$0xff]
    %v984 = vld [vmem:[#allocation6 + $0x61c] sm:$0xf]
    %v985 = vld [vmem:[#allocation6 + $0x620] sm:$0xff]
    %v986 = vld [vmem:[#allocation6 + $0x628] sm:$0xff]
    %v987 = vld [vmem:[#allocation6 + $0x630] sm:$0xff]
    %v988 = vld [vmem:[#allocation6 + $0x638] sm:$0xf]
    %v989 = vld [vmem:[#allocation6 + $0x63c] sm:$0xff]
    %v990 = vld [vmem:[#allocation6 + $0x644] sm:$0xff]
    %v991 = vld [vmem:[#allocation6 + $0x64c] sm:$0xff]
    %v992 = vld [vmem:[#allocation6 + $0x654] sm:$0xf]
    %v993 = vld [vmem:[#allocation6 + $0x658] sm:$0xff]
    %v994 = vld [vmem:[#allocation6 + $0x660] sm:$0xff]
    %v995 = vld [vmem:[#allocation6 + $0x668] sm:$0xff]
    %v996 = vld [vmem:[#allocation6 + $0x670] sm:$0xf]
    %v997 = vld [vmem:[#allocation6 + $0x674] sm:$0xff]
    %v998 = vld [vmem:[#allocation6 + $0x67c] sm:$0xff]
    %v999 = vld [vmem:[#allocation6 + $0x684] sm:$0xff]
    %v1000 = vld [vmem:[#allocation6 + $0x68c] sm:$0xf]
    %v1001 = vld [vmem:[#allocation6 + $0x690] sm:$0xff]
    %v1002 = vld [vmem:[#allocation6 + $0x698] sm:$0xff]
    %v1003 = vld [vmem:[#allocation6 + $0x6a0] sm:$0xff]
    %v1004 = vld [vmem:[#allocation6 + $0x6a8] sm:$0xf]
    %v1005 = vld [vmem:[#allocation6 + $0x6ac] sm:$0xff]
    %v1006 = vld [vmem:[#allocation6 + $0x6b4] sm:$0xff]
    %v1007 = vld [vmem:[#allocation6 + $0x6bc] sm:$0xff]
    %v1008 = vld [vmem:[#allocation6 + $0x6c4] sm:$0xf]
    %v1009 = vld [vmem:[#allocation6 + $0x6c8] sm:$0xff]
    %v1010 = vld [vmem:[#allocation6 + $0x6d0] sm:$0xff]
    %v1011 = vld [vmem:[#allocation6 + $0x6d8] sm:$0xff]
    %v1012 = vld [vmem:[#allocation6 + $0x6e0] sm:$0xf]
    %v1013 = vld [vmem:[#allocation6 + $0x6e4] sm:$0xff]
    %v1014 = vld [vmem:[#allocation6 + $0x6ec] sm:$0xff]
    %v1015 = vld [vmem:[#allocation6 + $0x6f4] sm:$0xff]
    %v1016 = vld [vmem:[#allocation6 + $0x6fc] sm:$0xf]
    %v1017 = vld [vmem:[%s6] sm:$0xff]
    %v1019 = vlaneseq
    %v1020 = vshrl.u32 %v1019, 7
    %v1021 = vsub.s32 0, %v1020
    %v1022 = vrot.slane %v1017, %v1021
    %v1023 = vlaneseq
    %v1024 = vshrl.u32 %v1023, 7
    %v1025 = vsub.s32 1, %v1024
    %v1026 = vrot.slane %v1017, %v1025
    %v1027 = vlaneseq
    %v1028 = vshrl.u32 %v1027, 7
    %v1029 = vsub.s32 2, %v1028
    %v1030 = vrot.slane %v1017, %v1029
    %v1031 = vlaneseq
    %v1032 = vshrl.u32 %v1031, 7
    %v1033 = vsub.s32 3, %v1032
    %v1034 = vrot.slane %v1017, %v1033
    %v1035 = vlaneseq
    %v1036 = vshrl.u32 %v1035, 7
    %v1037 = vsub.s32 4, %v1036
    %v1038 = vrot.slane %v1017, %v1037
    %v1039 = vlaneseq
    %v1040 = vshrl.u32 %v1039, 7
    %v1041 = vsub.s32 5, %v1040
    %v1042 = vrot.slane %v1017, %v1041
    %v1043 = vlaneseq
    %v1044 = vshrl.u32 %v1043, 7
    %v1045 = vsub.s32 6, %v1044
    %v1046 = vrot.slane %v1017, %v1045
    %v1310 = vunpack.c.l.b16 %v761
    %v1311 = vunpack.c.h.b16 %v761
    %v1312 = vunpack.c.l.b16 %v762
    %v1313 = vunpack.c.h.b16 %v762
    %v1314 = vunpack.c.l.b16 %v763
    %v1315 = vunpack.c.h.b16 %v763
    %v1316 = vunpack.c.l.b16 %v764
    %v1317 = vunpack.c.l.b16 %v765
    %v1318 = vunpack.c.h.b16 %v765
    %v1319 = vunpack.c.l.b16 %v766
    %v1320 = vunpack.c.h.b16 %v766
    %v1321 = vunpack.c.l.b16 %v767
    %v1322 = vunpack.c.h.b16 %v767
    %v1323 = vunpack.c.l.b16 %v768
    %v1324 = vunpack.c.l.b16 %v769
    %v1325 = vunpack.c.h.b16 %v769
    %v1326 = vunpack.c.l.b16 %v770
    %v1327 = vunpack.c.h.b16 %v770
    %v1328 = vunpack.c.l.b16 %v771
    %v1329 = vunpack.c.h.b16 %v771
    %v1330 = vunpack.c.l.b16 %v772
    %v1331 = vunpack.c.l.b16 %v773
    %v1332 = vunpack.c.h.b16 %v773
    %v1333 = vunpack.c.l.b16 %v774
    %v1334 = vunpack.c.h.b16 %v774
    %v1335 = vunpack.c.l.b16 %v775
    %v1336 = vunpack.c.h.b16 %v775
    %v1337 = vunpack.c.l.b16 %v776
    %v1338 = vunpack.c.l.b16 %v777
    %v1339 = vunpack.c.h.b16 %v777
    %v1340 = vunpack.c.l.b16 %v778
    %v1341 = vunpack.c.h.b16 %v778
    %v1342 = vunpack.c.l.b16 %v779
    %v1343 = vunpack.c.h.b16 %v779
    %v1344 = vunpack.c.l.b16 %v780
    %v1345 = vunpack.c.l.b16 %v781
    %v1346 = vunpack.c.h.b16 %v781
    %v1347 = vunpack.c.l.b16 %v782
    %v1348 = vunpack.c.h.b16 %v782
    %v1349 = vunpack.c.l.b16 %v783
    %v1350 = vunpack.c.h.b16 %v783
    %v1351 = vunpack.c.l.b16 %v784
    %v1352 = vunpack.c.l.b16 %v785
    %v1353 = vunpack.c.h.b16 %v785
    %v1354 = vunpack.c.l.b16 %v786
    %v1355 = vunpack.c.h.b16 %v786
    %v1356 = vunpack.c.l.b16 %v787
    %v1357 = vunpack.c.h.b16 %v787
    %v1358 = vunpack.c.l.b16 %v788
    %v1359 = vunpack.c.l.b16 %v789
    %v1360 = vunpack.c.h.b16 %v789
    %v1361 = vunpack.c.l.b16 %v790
    %v1362 = vunpack.c.h.b16 %v790
    %v1363 = vunpack.c.l.b16 %v791
    %v1364 = vunpack.c.h.b16 %v791
    %v1365 = vunpack.c.l.b16 %v792
    %v1366 = vunpack.c.l.b16 %v793
    %v1367 = vunpack.c.h.b16 %v793
    %v1368 = vunpack.c.l.b16 %v794
    %v1369 = vunpack.c.h.b16 %v794
    %v1370 = vunpack.c.l.b16 %v795
    %v1371 = vunpack.c.h.b16 %v795
    %v1372 = vunpack.c.l.b16 %v796
    %v1373 = vunpack.c.l.b16 %v797
    %v1374 = vunpack.c.h.b16 %v797
    %v1375 = vunpack.c.l.b16 %v798
    %v1376 = vunpack.c.h.b16 %v798
    %v1377 = vunpack.c.l.b16 %v799
    %v1378 = vunpack.c.h.b16 %v799
    %v1379 = vunpack.c.l.b16 %v800
    %v1380 = vunpack.c.l.b16 %v801
    %v1381 = vunpack.c.h.b16 %v801
    %v1382 = vunpack.c.l.b16 %v802
    %v1383 = vunpack.c.h.b16 %v802
    %v1384 = vunpack.c.l.b16 %v803
    %v1385 = vunpack.c.h.b16 %v803
    %v1386 = vunpack.c.l.b16 %v804
    %v1387 = vunpack.c.l.b16 %v805
    %v1388 = vunpack.c.h.b16 %v805
    %v1389 = vunpack.c.l.b16 %v806
    %v1390 = vunpack.c.h.b16 %v806
    %v1391 = vunpack.c.l.b16 %v807
    %v1392 = vunpack.c.h.b16 %v807
    %v1393 = vunpack.c.l.b16 %v808
    %v1394 = vunpack.c.l.b16 %v809
    %v1395 = vunpack.c.h.b16 %v809
    %v1396 = vunpack.c.l.b16 %v810
    %v1397 = vunpack.c.h.b16 %v810
    %v1398 = vunpack.c.l.b16 %v811
    %v1399 = vunpack.c.h.b16 %v811
    %v1400 = vunpack.c.l.b16 %v812
    %v1401 = vunpack.c.l.b16 %v813
    %v1402 = vunpack.c.h.b16 %v813
    %v1403 = vunpack.c.l.b16 %v814
    %v1404 = vunpack.c.h.b16 %v814
    %v1405 = vunpack.c.l.b16 %v815
    %v1406 = vunpack.c.h.b16 %v815
    %v1407 = vunpack.c.l.b16 %v816
    %v1408 = vunpack.c.l.b16 %v817
    %v1409 = vunpack.c.h.b16 %v817
    %v1410 = vunpack.c.l.b16 %v818
    %v1411 = vunpack.c.h.b16 %v818
    %v1412 = vunpack.c.l.b16 %v819
    %v1413 = vunpack.c.h.b16 %v819
    %v1414 = vunpack.c.l.b16 %v820
    %v1415 = vunpack.c.l.b16 %v821
    %v1416 = vunpack.c.h.b16 %v821
    %v1417 = vunpack.c.l.b16 %v822
    %v1418 = vunpack.c.h.b16 %v822
    %v1419 = vunpack.c.l.b16 %v823
    %v1420 = vunpack.c.h.b16 %v823
    %v1421 = vunpack.c.l.b16 %v824
    %v1422 = vunpack.c.l.b16 %v825
    %v1423 = vunpack.c.h.b16 %v825
    %v1424 = vunpack.c.l.b16 %v826
    %v1425 = vunpack.c.h.b16 %v826
    %v1426 = vunpack.c.l.b16 %v827
    %v1427 = vunpack.c.h.b16 %v827
    %v1428 = vunpack.c.l.b16 %v828
    %v1429 = vunpack.c.l.b16 %v829
    %v1430 = vunpack.c.h.b16 %v829
    %v1431 = vunpack.c.l.b16 %v830
    %v1432 = vunpack.c.h.b16 %v830
    %v1433 = vunpack.c.l.b16 %v831
    %v1434 = vunpack.c.h.b16 %v831
    %v1435 = vunpack.c.l.b16 %v832
    %v1436 = vunpack.c.l.b16 %v833
    %v1437 = vunpack.c.h.b16 %v833
    %v1438 = vunpack.c.l.b16 %v834
    %v1439 = vunpack.c.h.b16 %v834
    %v1440 = vunpack.c.l.b16 %v835
    %v1441 = vunpack.c.h.b16 %v835
    %v1442 = vunpack.c.l.b16 %v836
    %v1443 = vunpack.c.l.b16 %v837
    %v1444 = vunpack.c.h.b16 %v837
    %v1445 = vunpack.c.l.b16 %v838
    %v1446 = vunpack.c.h.b16 %v838
    %v1447 = vunpack.c.l.b16 %v839
    %v1448 = vunpack.c.h.b16 %v839
    %v1449 = vunpack.c.l.b16 %v840
    %v1450 = vunpack.c.l.b16 %v841
    %v1451 = vunpack.c.h.b16 %v841
    %v1452 = vunpack.c.l.b16 %v842
    %v1453 = vunpack.c.h.b16 %v842
    %v1454 = vunpack.c.l.b16 %v843
    %v1455 = vunpack.c.h.b16 %v843
    %v1456 = vunpack.c.l.b16 %v844
    %v1457 = vunpack.c.l.b16 %v845
    %v1458 = vunpack.c.h.b16 %v845
    %v1459 = vunpack.c.l.b16 %v846
    %v1460 = vunpack.c.h.b16 %v846
    %v1461 = vunpack.c.l.b16 %v847
    %v1462 = vunpack.c.h.b16 %v847
    %v1463 = vunpack.c.l.b16 %v848
    %v1464 = vunpack.c.l.b16 %v849
    %v1465 = vunpack.c.h.b16 %v849
    %v1466 = vunpack.c.l.b16 %v850
    %v1467 = vunpack.c.h.b16 %v850
    %v1468 = vunpack.c.l.b16 %v851
    %v1469 = vunpack.c.h.b16 %v851
    %v1470 = vunpack.c.l.b16 %v852
    %v1471 = vunpack.c.l.b16 %v853
    %v1472 = vunpack.c.h.b16 %v853
    %v1473 = vunpack.c.l.b16 %v854
    %v1474 = vunpack.c.h.b16 %v854
    %v1475 = vunpack.c.l.b16 %v855
    %v1476 = vunpack.c.h.b16 %v855
    %v1477 = vunpack.c.l.b16 %v856
    %v1478 = vunpack.c.l.b16 %v857
    %v1479 = vunpack.c.h.b16 %v857
    %v1480 = vunpack.c.l.b16 %v858
    %v1481 = vunpack.c.h.b16 %v858
    %v1482 = vunpack.c.l.b16 %v859
    %v1483 = vunpack.c.h.b16 %v859
    %v1484 = vunpack.c.l.b16 %v860
    %v1485 = vunpack.c.l.b16 %v861
    %v1486 = vunpack.c.h.b16 %v861
    %v1487 = vunpack.c.l.b16 %v862
    %v1488 = vunpack.c.h.b16 %v862
    %v1489 = vunpack.c.l.b16 %v863
    %v1490 = vunpack.c.h.b16 %v863
    %v1491 = vunpack.c.l.b16 %v864
    %v1492 = vunpack.c.l.b16 %v865
    %v1493 = vunpack.c.h.b16 %v865
    %v1494 = vunpack.c.l.b16 %v866
    %v1495 = vunpack.c.h.b16 %v866
    %v1496 = vunpack.c.l.b16 %v867
    %v1497 = vunpack.c.h.b16 %v867
    %v1498 = vunpack.c.l.b16 %v868
    %v1499 = vunpack.c.l.b16 %v869
    %v1500 = vunpack.c.h.b16 %v869
    %v1501 = vunpack.c.l.b16 %v870
    %v1502 = vunpack.c.h.b16 %v870
    %v1503 = vunpack.c.l.b16 %v871
    %v1504 = vunpack.c.h.b16 %v871
    %v1505 = vunpack.c.l.b16 %v872
    %v1506 = vunpack.c.l.b16 %v873
    %v1507 = vunpack.c.h.b16 %v873
    %v1508 = vunpack.c.l.b16 %v874
    %v1509 = vunpack.c.h.b16 %v874
    %v1510 = vunpack.c.l.b16 %v875
    %v1511 = vunpack.c.h.b16 %v875
    %v1512 = vunpack.c.l.b16 %v876
    %v1513 = vunpack.c.l.b16 %v877
    %v1514 = vunpack.c.h.b16 %v877
    %v1515 = vunpack.c.l.b16 %v878
    %v1516 = vunpack.c.h.b16 %v878
    %v1517 = vunpack.c.l.b16 %v879
    %v1518 = vunpack.c.h.b16 %v879
    %v1519 = vunpack.c.l.b16 %v880
    %v1520 = vunpack.c.l.b16 %v881
    %v1521 = vunpack.c.h.b16 %v881
    %v1522 = vunpack.c.l.b16 %v882
    %v1523 = vunpack.c.h.b16 %v882
    %v1524 = vunpack.c.l.b16 %v883
    %v1525 = vunpack.c.h.b16 %v883
    %v1526 = vunpack.c.l.b16 %v884
    %v1527 = vunpack.c.l.b16 %v885
    %v1528 = vunpack.c.h.b16 %v885
    %v1529 = vunpack.c.l.b16 %v886
    %v1530 = vunpack.c.h.b16 %v886
    %v1531 = vunpack.c.l.b16 %v887
    %v1532 = vunpack.c.h.b16 %v887
    %v1533 = vunpack.c.l.b16 %v888
    %v1534 = vunpack.c.l.b16 %v889
    %v1535 = vunpack.c.h.b16 %v889
    %v1536 = vunpack.c.l.b16 %v890
    %v1537 = vunpack.c.h.b16 %v890
    %v1538 = vunpack.c.l.b16 %v891
    %v1539 = vunpack.c.h.b16 %v891
    %v1540 = vunpack.c.l.b16 %v892
    %v1541 = vunpack.c.l.b16 %v893
    %v1542 = vunpack.c.h.b16 %v893
    %v1543 = vunpack.c.l.b16 %v894
    %v1544 = vunpack.c.h.b16 %v894
    %v1545 = vunpack.c.l.b16 %v895
    %v1546 = vunpack.c.h.b16 %v895
    %v1547 = vunpack.c.l.b16 %v896
    %v1548 = vunpack.c.l.b16 %v897
    %v1549 = vunpack.c.h.b16 %v897
    %v1550 = vunpack.c.l.b16 %v898
    %v1551 = vunpack.c.h.b16 %v898
    %v1552 = vunpack.c.l.b16 %v899
    %v1553 = vunpack.c.h.b16 %v899
    %v1554 = vunpack.c.l.b16 %v900
    %v1555 = vunpack.c.l.b16 %v901
    %v1556 = vunpack.c.h.b16 %v901
    %v1557 = vunpack.c.l.b16 %v902
    %v1558 = vunpack.c.h.b16 %v902
    %v1559 = vunpack.c.l.b16 %v903
    %v1560 = vunpack.c.h.b16 %v903
    %v1561 = vunpack.c.l.b16 %v904
    %v1562 = vunpack.c.l.b16 %v905
    %v1563 = vunpack.c.h.b16 %v905
    %v1564 = vunpack.c.l.b16 %v906
    %v1565 = vunpack.c.h.b16 %v906
    %v1566 = vunpack.c.l.b16 %v907
    %v1567 = vunpack.c.h.b16 %v907
    %v1568 = vunpack.c.l.b16 %v908
    %v1569 = vunpack.c.l.b16 %v909
    %v1570 = vunpack.c.h.b16 %v909
    %v1571 = vunpack.c.l.b16 %v910
    %v1572 = vunpack.c.h.b16 %v910
    %v1573 = vunpack.c.l.b16 %v911
    %v1574 = vunpack.c.h.b16 %v911
    %v1575 = vunpack.c.l.b16 %v912
    %v1576 = vunpack.c.l.b16 %v913
    %v1577 = vunpack.c.h.b16 %v913
    %v1578 = vunpack.c.l.b16 %v914
    %v1579 = vunpack.c.h.b16 %v914
    %v1580 = vunpack.c.l.b16 %v915
    %v1581 = vunpack.c.h.b16 %v915
    %v1582 = vunpack.c.l.b16 %v916
    %v1583 = vunpack.c.l.b16 %v917
    %v1584 = vunpack.c.h.b16 %v917
    %v1585 = vunpack.c.l.b16 %v918
    %v1586 = vunpack.c.h.b16 %v918
    %v1587 = vunpack.c.l.b16 %v919
    %v1588 = vunpack.c.h.b16 %v919
    %v1589 = vunpack.c.l.b16 %v920
    %v1590 = vunpack.c.l.b16 %v921
    %v1591 = vunpack.c.h.b16 %v921
    %v1592 = vunpack.c.l.b16 %v922
    %v1593 = vunpack.c.h.b16 %v922
    %v1594 = vunpack.c.l.b16 %v923
    %v1595 = vunpack.c.h.b16 %v923
    %v1596 = vunpack.c.l.b16 %v924
    %v1597 = vunpack.c.l.b16 %v925
    %v1598 = vunpack.c.h.b16 %v925
    %v1599 = vunpack.c.l.b16 %v926
    %v1600 = vunpack.c.h.b16 %v926
    %v1601 = vunpack.c.l.b16 %v927
    %v1602 = vunpack.c.h.b16 %v927
    %v1603 = vunpack.c.l.b16 %v928
    %v1604 = vunpack.c.l.b16 %v929
    %v1605 = vunpack.c.h.b16 %v929
    %v1606 = vunpack.c.l.b16 %v930
    %v1607 = vunpack.c.h.b16 %v930
    %v1608 = vunpack.c.l.b16 %v931
    %v1609 = vunpack.c.h.b16 %v931
    %v1610 = vunpack.c.l.b16 %v932
    %v1611 = vunpack.c.l.b16 %v933
    %v1612 = vunpack.c.h.b16 %v933
    %v1613 = vunpack.c.l.b16 %v934
    %v1614 = vunpack.c.h.b16 %v934
    %v1615 = vunpack.c.l.b16 %v935
    %v1616 = vunpack.c.h.b16 %v935
    %v1617 = vunpack.c.l.b16 %v936
    %v1618 = vunpack.c.l.b16 %v937
    %v1619 = vunpack.c.h.b16 %v937
    %v1620 = vunpack.c.l.b16 %v938
    %v1621 = vunpack.c.h.b16 %v938
    %v1622 = vunpack.c.l.b16 %v939
    %v1623 = vunpack.c.h.b16 %v939
    %v1624 = vunpack.c.l.b16 %v940
    %v1625 = vunpack.c.l.b16 %v941
    %v1626 = vunpack.c.h.b16 %v941
    %v1627 = vunpack.c.l.b16 %v942
    %v1628 = vunpack.c.h.b16 %v942
    %v1629 = vunpack.c.l.b16 %v943
    %v1630 = vunpack.c.h.b16 %v943
    %v1631 = vunpack.c.l.b16 %v944
    %v1632 = vunpack.c.l.b16 %v945
    %v1633 = vunpack.c.h.b16 %v945
    %v1634 = vunpack.c.l.b16 %v946
    %v1635 = vunpack.c.h.b16 %v946
    %v1636 = vunpack.c.l.b16 %v947
    %v1637 = vunpack.c.h.b16 %v947
    %v1638 = vunpack.c.l.b16 %v948
    %v1639 = vunpack.c.l.b16 %v949
    %v1640 = vunpack.c.h.b16 %v949
    %v1641 = vunpack.c.l.b16 %v950
    %v1642 = vunpack.c.h.b16 %v950
    %v1643 = vunpack.c.l.b16 %v951
    %v1644 = vunpack.c.h.b16 %v951
    %v1645 = vunpack.c.l.b16 %v952
    %v1646 = vunpack.c.l.b16 %v953
    %v1647 = vunpack.c.h.b16 %v953
    %v1648 = vunpack.c.l.b16 %v954
    %v1649 = vunpack.c.h.b16 %v954
    %v1650 = vunpack.c.l.b16 %v955
    %v1651 = vunpack.c.h.b16 %v955
    %v1652 = vunpack.c.l.b16 %v956
    %v1653 = vunpack.c.l.b16 %v957
    %v1654 = vunpack.c.h.b16 %v957
    %v1655 = vunpack.c.l.b16 %v958
    %v1656 = vunpack.c.h.b16 %v958
    %v1657 = vunpack.c.l.b16 %v959
    %v1658 = vunpack.c.h.b16 %v959
    %v1659 = vunpack.c.l.b16 %v960
    %v1660 = vunpack.c.l.b16 %v961
    %v1661 = vunpack.c.h.b16 %v961
    %v1662 = vunpack.c.l.b16 %v962
    %v1663 = vunpack.c.h.b16 %v962
    %v1664 = vunpack.c.l.b16 %v963
    %v1665 = vunpack.c.h.b16 %v963
    %v1666 = vunpack.c.l.b16 %v964
    %v1667 = vunpack.c.l.b16 %v965
    %v1668 = vunpack.c.h.b16 %v965
    %v1669 = vunpack.c.l.b16 %v966
    %v1670 = vunpack.c.h.b16 %v966
    %v1671 = vunpack.c.l.b16 %v967
    %v1672 = vunpack.c.h.b16 %v967
    %v1673 = vunpack.c.l.b16 %v968
    %v1674 = vunpack.c.l.b16 %v969
    %v1675 = vunpack.c.h.b16 %v969
    %v1676 = vunpack.c.l.b16 %v970
    %v1677 = vunpack.c.h.b16 %v970
    %v1678 = vunpack.c.l.b16 %v971
    %v1679 = vunpack.c.h.b16 %v971
    %v1680 = vunpack.c.l.b16 %v972
    %v1681 = vunpack.c.l.b16 %v973
    %v1682 = vunpack.c.h.b16 %v973
    %v1683 = vunpack.c.l.b16 %v974
    %v1684 = vunpack.c.h.b16 %v974
    %v1685 = vunpack.c.l.b16 %v975
    %v1686 = vunpack.c.h.b16 %v975
    %v1687 = vunpack.c.l.b16 %v976
    %v1688 = vunpack.c.l.b16 %v977
    %v1689 = vunpack.c.h.b16 %v977
    %v1690 = vunpack.c.l.b16 %v978
    %v1691 = vunpack.c.h.b16 %v978
    %v1692 = vunpack.c.l.b16 %v979
    %v1693 = vunpack.c.h.b16 %v979
    %v1694 = vunpack.c.l.b16 %v980
    %v1695 = vunpack.c.l.b16 %v981
    %v1696 = vunpack.c.h.b16 %v981
    %v1697 = vunpack.c.l.b16 %v982
    %v1698 = vunpack.c.h.b16 %v982
    %v1699 = vunpack.c.l.b16 %v983
    %v1700 = vunpack.c.h.b16 %v983
    %v1701 = vunpack.c.l.b16 %v984
    %v1702 = vunpack.c.l.b16 %v985
    %v1703 = vunpack.c.h.b16 %v985
    %v1704 = vunpack.c.l.b16 %v986
    %v1705 = vunpack.c.h.b16 %v986
    %v1706 = vunpack.c.l.b16 %v987
    %v1707 = vunpack.c.h.b16 %v987
    %v1708 = vunpack.c.l.b16 %v988
    %v1709 = vunpack.c.l.b16 %v989
    %v1710 = vunpack.c.h.b16 %v989
    %v1711 = vunpack.c.l.b16 %v990
    %v1712 = vunpack.c.h.b16 %v990
    %v1713 = vunpack.c.l.b16 %v991
    %v1714 = vunpack.c.h.b16 %v991
    %v1715 = vunpack.c.l.b16 %v992
    %v1716 = vunpack.c.l.b16 %v993
    %v1717 = vunpack.c.h.b16 %v993
    %v1718 = vunpack.c.l.b16 %v994
    %v1719 = vunpack.c.h.b16 %v994
    %v1720 = vunpack.c.l.b16 %v995
    %v1721 = vunpack.c.h.b16 %v995
    %v1722 = vunpack.c.l.b16 %v996
    %v1723 = vunpack.c.l.b16 %v997
    %v1724 = vunpack.c.h.b16 %v997
    %v1725 = vunpack.c.l.b16 %v998
    %v1726 = vunpack.c.h.b16 %v998
    %v1727 = vunpack.c.l.b16 %v999
    %v1728 = vunpack.c.h.b16 %v999
    %v1729 = vunpack.c.l.b16 %v1000
    %v1730 = vunpack.c.l.b16 %v1001
    %v1731 = vunpack.c.h.b16 %v1001
    %v1732 = vunpack.c.l.b16 %v1002
    %v1733 = vunpack.c.h.b16 %v1002
    %v1734 = vunpack.c.l.b16 %v1003
    %v1735 = vunpack.c.h.b16 %v1003
    %v1736 = vunpack.c.l.b16 %v1004
    %v1737 = vunpack.c.l.b16 %v1005
    %v1738 = vunpack.c.h.b16 %v1005
    %v1739 = vunpack.c.l.b16 %v1006
    %v1740 = vunpack.c.h.b16 %v1006
    %v1741 = vunpack.c.l.b16 %v1007
    %v1742 = vunpack.c.h.b16 %v1007
    %v1743 = vunpack.c.l.b16 %v1008
    %v1744 = vunpack.c.l.b16 %v1009
    %v1745 = vunpack.c.h.b16 %v1009
    %v1746 = vunpack.c.l.b16 %v1010
    %v1747 = vunpack.c.h.b16 %v1010
    %v1748 = vunpack.c.l.b16 %v1011
    %v1749 = vunpack.c.h.b16 %v1011
    %v1750 = vunpack.c.l.b16 %v1012
    %v1751 = vunpack.c.l.b16 %v1013
    %v1752 = vunpack.c.h.b16 %v1013
    %v1753 = vunpack.c.l.b16 %v1014
    %v1754 = vunpack.c.h.b16 %v1014
    %v1755 = vunpack.c.l.b16 %v1015
    %v1756 = vunpack.c.h.b16 %v1015
    %v1757 = vunpack.c.l.b16 %v1016
    %v1758 = vpack.c.b16 %v1317, %v1310
    %v1759 = vpack.c.b16 %v1318, %v1311
    %v1760 = vpack.c.b16 %v1319, %v1312
    %v1761 = vpack.c.b16 %v1320, %v1313
    %v1762 = vpack.c.b16 %v1321, %v1314
    %v1763 = vpack.c.b16 %v1322, %v1315
    %v1764 = vpack.c.b16 %v1323, %v1316
    %v1765 = vpack.c.b16 %v1331, %v1324
    %v1766 = vpack.c.b16 %v1332, %v1325
    %v1767 = vpack.c.b16 %v1333, %v1326
    %v1768 = vpack.c.b16 %v1334, %v1327
    %v1769 = vpack.c.b16 %v1335, %v1328
    %v1770 = vpack.c.b16 %v1336, %v1329
    %v1771 = vpack.c.b16 %v1337, %v1330
    %v1772 = vpack.c.b16 %v1345, %v1338
    %v1773 = vpack.c.b16 %v1346, %v1339
    %v1774 = vpack.c.b16 %v1347, %v1340
    %v1775 = vpack.c.b16 %v1348, %v1341
    %v1776 = vpack.c.b16 %v1349, %v1342
    %v1777 = vpack.c.b16 %v1350, %v1343
    %v1778 = vpack.c.b16 %v1351, %v1344
    %v1779 = vpack.c.b16 %v1359, %v1352
    %v1780 = vpack.c.b16 %v1360, %v1353
    %v1781 = vpack.c.b16 %v1361, %v1354
    %v1782 = vpack.c.b16 %v1362, %v1355
    %v1783 = vpack.c.b16 %v1363, %v1356
    %v1784 = vpack.c.b16 %v1364, %v1357
    %v1785 = vpack.c.b16 %v1365, %v1358
    %v1786 = vpack.c.b16 %v1373, %v1366
    %v1787 = vpack.c.b16 %v1374, %v1367
    %v1788 = vpack.c.b16 %v1375, %v1368
    %v1789 = vpack.c.b16 %v1376, %v1369
    %v1790 = vpack.c.b16 %v1377, %v1370
    %v1791 = vpack.c.b16 %v1378, %v1371
    %v1792 = vpack.c.b16 %v1379, %v1372
    %v1793 = vpack.c.b16 %v1387, %v1380
    %v1794 = vpack.c.b16 %v1388, %v1381
    %v1795 = vpack.c.b16 %v1389, %v1382
    %v1796 = vpack.c.b16 %v1390, %v1383
    %v1797 = vpack.c.b16 %v1391, %v1384
    %v1798 = vpack.c.b16 %v1392, %v1385
    %v1799 = vpack.c.b16 %v1393, %v1386
    %v1800 = vpack.c.b16 %v1401, %v1394
    %v1801 = vpack.c.b16 %v1402, %v1395
    %v1802 = vpack.c.b16 %v1403, %v1396
    %v1803 = vpack.c.b16 %v1404, %v1397
    %v1804 = vpack.c.b16 %v1405, %v1398
    %v1805 = vpack.c.b16 %v1406, %v1399
    %v1806 = vpack.c.b16 %v1407, %v1400
    %v1807 = vpack.c.b16 %v1415, %v1408
    %v1808 = vpack.c.b16 %v1416, %v1409
    %v1809 = vpack.c.b16 %v1417, %v1410
    %v1810 = vpack.c.b16 %v1418, %v1411
    %v1811 = vpack.c.b16 %v1419, %v1412
    %v1812 = vpack.c.b16 %v1420, %v1413
    %v1813 = vpack.c.b16 %v1421, %v1414
    %v1814 = vpack.c.b16 %v1429, %v1422
    %v1815 = vpack.c.b16 %v1430, %v1423
    %v1816 = vpack.c.b16 %v1431, %v1424
    %v1817 = vpack.c.b16 %v1432, %v1425
    %v1818 = vpack.c.b16 %v1433, %v1426
    %v1819 = vpack.c.b16 %v1434, %v1427
    %v1820 = vpack.c.b16 %v1435, %v1428
    %v1821 = vpack.c.b16 %v1443, %v1436
    %v1822 = vpack.c.b16 %v1444, %v1437
    %v1823 = vpack.c.b16 %v1445, %v1438
    %v1824 = vpack.c.b16 %v1446, %v1439
    %v1825 = vpack.c.b16 %v1447, %v1440
    %v1826 = vpack.c.b16 %v1448, %v1441
    %v1827 = vpack.c.b16 %v1449, %v1442
    %v1828 = vpack.c.b16 %v1457, %v1450
    %v1829 = vpack.c.b16 %v1458, %v1451
    %v1830 = vpack.c.b16 %v1459, %v1452
    %v1831 = vpack.c.b16 %v1460, %v1453
    %v1832 = vpack.c.b16 %v1461, %v1454
    %v1833 = vpack.c.b16 %v1462, %v1455
    %v1834 = vpack.c.b16 %v1463, %v1456
    %v1835 = vpack.c.b16 %v1471, %v1464
    %v1836 = vpack.c.b16 %v1472, %v1465
    %v1837 = vpack.c.b16 %v1473, %v1466
    %v1838 = vpack.c.b16 %v1474, %v1467
    %v1839 = vpack.c.b16 %v1475, %v1468
    %v1840 = vpack.c.b16 %v1476, %v1469
    %v1841 = vpack.c.b16 %v1477, %v1470
    %v1842 = vpack.c.b16 %v1485, %v1478
    %v1843 = vpack.c.b16 %v1486, %v1479
    %v1844 = vpack.c.b16 %v1487, %v1480
    %v1845 = vpack.c.b16 %v1488, %v1481
    %v1846 = vpack.c.b16 %v1489, %v1482
    %v1847 = vpack.c.b16 %v1490, %v1483
    %v1848 = vpack.c.b16 %v1491, %v1484
    %v1849 = vpack.c.b16 %v1499, %v1492
    %v1850 = vpack.c.b16 %v1500, %v1493
    %v1851 = vpack.c.b16 %v1501, %v1494
    %v1852 = vpack.c.b16 %v1502, %v1495
    %v1853 = vpack.c.b16 %v1503, %v1496
    %v1854 = vpack.c.b16 %v1504, %v1497
    %v1855 = vpack.c.b16 %v1505, %v1498
    %v1856 = vpack.c.b16 %v1513, %v1506
    %v1857 = vpack.c.b16 %v1514, %v1507
    %v1858 = vpack.c.b16 %v1515, %v1508
    %v1859 = vpack.c.b16 %v1516, %v1509
    %v1860 = vpack.c.b16 %v1517, %v1510
    %v1861 = vpack.c.b16 %v1518, %v1511
    %v1862 = vpack.c.b16 %v1519, %v1512
    %v1863 = vpack.c.b16 %v1527, %v1520
    %v1864 = vpack.c.b16 %v1528, %v1521
    %v1865 = vpack.c.b16 %v1529, %v1522
    %v1866 = vpack.c.b16 %v1530, %v1523
    %v1867 = vpack.c.b16 %v1531, %v1524
    %v1868 = vpack.c.b16 %v1532, %v1525
    %v1869 = vpack.c.b16 %v1533, %v1526
    %v1870 = vpack.c.b16 %v1541, %v1534
    %v1871 = vpack.c.b16 %v1542, %v1535
    %v1872 = vpack.c.b16 %v1543, %v1536
    %v1873 = vpack.c.b16 %v1544, %v1537
    %v1874 = vpack.c.b16 %v1545, %v1538
    %v1875 = vpack.c.b16 %v1546, %v1539
    %v1876 = vpack.c.b16 %v1547, %v1540
    %v1877 = vpack.c.b16 %v1555, %v1548
    %v1878 = vpack.c.b16 %v1556, %v1549
    %v1879 = vpack.c.b16 %v1557, %v1550
    %v1880 = vpack.c.b16 %v1558, %v1551
    %v1881 = vpack.c.b16 %v1559, %v1552
    %v1882 = vpack.c.b16 %v1560, %v1553
    %v1883 = vpack.c.b16 %v1561, %v1554
    %v1884 = vpack.c.b16 %v1569, %v1562
    %v1885 = vpack.c.b16 %v1570, %v1563
    %v1886 = vpack.c.b16 %v1571, %v1564
    %v1887 = vpack.c.b16 %v1572, %v1565
    %v1888 = vpack.c.b16 %v1573, %v1566
    %v1889 = vpack.c.b16 %v1574, %v1567
    %v1890 = vpack.c.b16 %v1575, %v1568
    %v1891 = vpack.c.b16 %v1583, %v1576
    %v1892 = vpack.c.b16 %v1584, %v1577
    %v1893 = vpack.c.b16 %v1585, %v1578
    %v1894 = vpack.c.b16 %v1586, %v1579
    %v1895 = vpack.c.b16 %v1587, %v1580
    %v1896 = vpack.c.b16 %v1588, %v1581
    %v1897 = vpack.c.b16 %v1589, %v1582
    %v1898 = vpack.c.b16 %v1597, %v1590
    %v1899 = vpack.c.b16 %v1598, %v1591
    %v1900 = vpack.c.b16 %v1599, %v1592
    %v1901 = vpack.c.b16 %v1600, %v1593
    %v1902 = vpack.c.b16 %v1601, %v1594
    %v1903 = vpack.c.b16 %v1602, %v1595
    %v1904 = vpack.c.b16 %v1603, %v1596
    %v1905 = vpack.c.b16 %v1611, %v1604
    %v1906 = vpack.c.b16 %v1612, %v1605
    %v1907 = vpack.c.b16 %v1613, %v1606
    %v1908 = vpack.c.b16 %v1614, %v1607
    %v1909 = vpack.c.b16 %v1615, %v1608
    %v1910 = vpack.c.b16 %v1616, %v1609
    %v1911 = vpack.c.b16 %v1617, %v1610
    %v1912 = vpack.c.b16 %v1625, %v1618
    %v1913 = vpack.c.b16 %v1626, %v1619
    %v1914 = vpack.c.b16 %v1627, %v1620
    %v1915 = vpack.c.b16 %v1628, %v1621
    %v1916 = vpack.c.b16 %v1629, %v1622
    %v1917 = vpack.c.b16 %v1630, %v1623
    %v1918 = vpack.c.b16 %v1631, %v1624
    %v1919 = vpack.c.b16 %v1639, %v1632
    %v1920 = vpack.c.b16 %v1640, %v1633
    %v1921 = vpack.c.b16 %v1641, %v1634
    %v1922 = vpack.c.b16 %v1642, %v1635
    %v1923 = vpack.c.b16 %v1643, %v1636
    %v1924 = vpack.c.b16 %v1644, %v1637
    %v1925 = vpack.c.b16 %v1645, %v1638
    %v1926 = vpack.c.b16 %v1653, %v1646
    %v1927 = vpack.c.b16 %v1654, %v1647
    %v1928 = vpack.c.b16 %v1655, %v1648
    %v1929 = vpack.c.b16 %v1656, %v1649
    %v1930 = vpack.c.b16 %v1657, %v1650
    %v1931 = vpack.c.b16 %v1658, %v1651
    %v1932 = vpack.c.b16 %v1659, %v1652
    %v1933 = vpack.c.b16 %v1667, %v1660
    %v1934 = vpack.c.b16 %v1668, %v1661
    %v1935 = vpack.c.b16 %v1669, %v1662
    %v1936 = vpack.c.b16 %v1670, %v1663
    %v1937 = vpack.c.b16 %v1671, %v1664
    %v1938 = vpack.c.b16 %v1672, %v1665
    %v1939 = vpack.c.b16 %v1673, %v1666
    %v1940 = vpack.c.b16 %v1681, %v1674
    %v1941 = vpack.c.b16 %v1682, %v1675
    %v1942 = vpack.c.b16 %v1683, %v1676
    %v1943 = vpack.c.b16 %v1684, %v1677
    %v1944 = vpack.c.b16 %v1685, %v1678
    %v1945 = vpack.c.b16 %v1686, %v1679
    %v1946 = vpack.c.b16 %v1687, %v1680
    %v1947 = vpack.c.b16 %v1695, %v1688
    %v1948 = vpack.c.b16 %v1696, %v1689
    %v1949 = vpack.c.b16 %v1697, %v1690
    %v1950 = vpack.c.b16 %v1698, %v1691
    %v1951 = vpack.c.b16 %v1699, %v1692
    %v1952 = vpack.c.b16 %v1700, %v1693
    %v1953 = vpack.c.b16 %v1701, %v1694
    %v1954 = vpack.c.b16 %v1709, %v1702
    %v1955 = vpack.c.b16 %v1710, %v1703
    %v1956 = vpack.c.b16 %v1711, %v1704
    %v1957 = vpack.c.b16 %v1712, %v1705
    %v1958 = vpack.c.b16 %v1713, %v1706
    %v1959 = vpack.c.b16 %v1714, %v1707
    %v1960 = vpack.c.b16 %v1715, %v1708
    %v1961 = vpack.c.b16 %v1723, %v1716
    %v1962 = vpack.c.b16 %v1724, %v1717
    %v1963 = vpack.c.b16 %v1725, %v1718
    %v1964 = vpack.c.b16 %v1726, %v1719
    %v1965 = vpack.c.b16 %v1727, %v1720
    %v1966 = vpack.c.b16 %v1728, %v1721
    %v1967 = vpack.c.b16 %v1729, %v1722
    %v1968 = vpack.c.b16 %v1737, %v1730
    %v1969 = vpack.c.b16 %v1738, %v1731
    %v1970 = vpack.c.b16 %v1739, %v1732
    %v1971 = vpack.c.b16 %v1740, %v1733
    %v1972 = vpack.c.b16 %v1741, %v1734
    %v1973 = vpack.c.b16 %v1742, %v1735
    %v1974 = vpack.c.b16 %v1743, %v1736
    %v1975 = vpack.c.b16 %v1751, %v1744
    %v1976 = vpack.c.b16 %v1752, %v1745
    %v1977 = vpack.c.b16 %v1753, %v1746
    %v1978 = vpack.c.b16 %v1754, %v1747
    %v1979 = vpack.c.b16 %v1755, %v1748
    %v1980 = vpack.c.b16 %v1756, %v1749
    %v1981 = vpack.c.b16 %v1757, %v1750
    %2206 = vmatprep.subr.bf16.mxu0 %v1759
    %2207 = vmatpush1.bf16.msra.mxu0 %v1758
    %2208 = vmatprep.subr.bf16.mxu0 %v1766
    %2209 = vmatpush1.bf16.msra.mxu0 %v1765
    %2210 = vmatprep.subr.bf16.mxu0 %v1773
    %2211 = vmatpush1.bf16.msra.mxu0 %v1772
    %2212 = vmatprep.subr.bf16.mxu0 %v1780
    %2213 = vmatpush1.bf16.msra.mxu0 %v1779
    %2214 = vmatprep.subr.bf16.mxu0 %v1787
    %2215 = vmatpush1.bf16.msra.mxu0 %v1786
    %2216 = vmatprep.subr.bf16.mxu0 %v1794
    %2217 = vmatpush1.bf16.msra.mxu0 %v1793
    %2218 = vmatprep.subr.bf16.mxu0 %v1801
    %2219 = vmatpush1.bf16.msra.mxu0 %v1800
    %2220 = vmatprep.subr.bf16.mxu0 %v1808
    %2221 = vmatpush1.bf16.msra.mxu0 %v1807
    %2222 = vmatprep.subr.bf16.mxu0 %v1815
    %2223 = vmatpush1.bf16.msra.mxu0 %v1814
    %2224 = vmatprep.subr.bf16.mxu0 %v1822
    %2225 = vmatpush1.bf16.msra.mxu0 %v1821
    %2226 = vmatprep.subr.bf16.mxu0 %v1829
    %2227 = vmatpush1.bf16.msra.mxu0 %v1828
    %2228 = vmatprep.subr.bf16.mxu0 %v1836
    %2229 = vmatpush1.bf16.msra.mxu0 %v1835
    %2230 = vmatprep.subr.bf16.mxu0 %v1843
    %2231 = vmatpush1.bf16.msra.mxu0 %v1842
    %2232 = vmatprep.subr.bf16.mxu0 %v1850
    %2233 = vmatpush1.bf16.msra.mxu0 %v1849
    %2234 = vmatprep.subr.bf16.mxu0 %v1857
    %2235 = vmatpush1.bf16.msra.mxu0 %v1856
    %2236 = vmatprep.subr.bf16.mxu0 %v1864
    %2237 = vmatpush1.bf16.msra.mxu0 %v1863
    %2238 = vmatprep.mubr.bf16.mxu0 %v758
    %2239 = vmatmul.mubr.bf16.gmra.mrb[0].mxu0 %v757
    %v2240 = vpop.f32.mrb[0].mxu0
    %v2241 = vadd.f32 %v1022, %v2240
    %v2242 = vpop.f32.mrb[0].mxu0
    %v2243 = vadd.f32 %v1026, %v2242
    %v2244 = vpop.f32.mrb[0].mxu0
    %v2245 = vadd.f32 %v1022, %v2244
    %v2246 = vpop.f32.mrb[0].mxu0
    %v2247 = vadd.f32 %v1026, %v2246
    %2248 = vdwg.mxu0
    %2249 = vmatprep.subr.bf16.mxu0 %v1871
    %2250 = vmatpush1.bf16.msra.mxu0 %v1870
    %2251 = vmatprep.subr.bf16.mxu0 %v1878
    %2252 = vmatpush1.bf16.msra.mxu0 %v1877
    %2253 = vmatprep.subr.bf16.mxu0 %v1885
    %2254 = vmatpush1.bf16.msra.mxu0 %v1884
    %2255 = vmatprep.subr.bf16.mxu0 %v1892
    %2256 = vmatpush1.bf16.msra.mxu0 %v1891
    %2257 = vmatprep.subr.bf16.mxu0 %v1899
    %2258 = vmatpush1.bf16.msra.mxu0 %v1898
    %2259 = vmatprep.subr.bf16.mxu0 %v1906
    %2260 = vmatpush1.bf16.msra.mxu0 %v1905
    %2261 = vmatprep.subr.bf16.mxu0 %v1913
    %2262 = vmatpush1.bf16.msra.mxu0 %v1912
    %2263 = vmatprep.subr.bf16.mxu0 %v1920
    %2264 = vmatpush1.bf16.msra.mxu0 %v1919
    %2265 = vmatprep.subr.bf16.mxu0 %v1927
    %2266 = vmatpush1.bf16.msra.mxu0 %v1926
    %2267 = vmatprep.subr.bf16.mxu0 %v1934
    %2268 = vmatpush1.bf16.msra.mxu0 %v1933
    %2269 = vmatprep.subr.bf16.mxu0 %v1941
    %2270 = vmatpush1.bf16.msra.mxu0 %v1940
    %2271 = vmatprep.subr.bf16.mxu0 %v1948
    %2272 = vmatpush1.bf16.msra.mxu0 %v1947
    %2273 = vmatprep.subr.bf16.mxu0 %v1955
    %2274 = vmatpush1.bf16.msra.mxu0 %v1954
    %2275 = vmatprep.subr.bf16.mxu0 %v1962
    %2276 = vmatpush1.bf16.msra.mxu0 %v1961
    %2277 = vmatprep.subr.bf16.mxu0 %v1969
    %2278 = vmatpush1.bf16.msra.mxu0 %v1968
    %2279 = vmatprep.subr.bf16.mxu0 %v1976
    %2280 = vmatpush1.bf16.msra.mxu0 %v1975
    %2281 = vmatprep.mubr.bf16.mxu0 %v760
    %2282 = vmatmul.mubr.bf16.gmra.mrb[0].mxu0 %v759
    %v2283 = vpop.f32.mrb[0].mxu0
    %v2284 = vadd.f32 %v2241, %v2283
    %v2285 = vpop.f32.mrb[0].mxu0
    %v2286 = vadd.f32 %v2243, %v2285
    %v2287 = vpop.f32.mrb[0].mxu0
    %v2288 = vadd.f32 %v2245, %v2287
    %v2289 = vpop.f32.mrb[0].mxu0
    %v2290 = vadd.f32 %v2247, %v2289
    %2291 = vdwg.mxu0
    %2292 = vmatprep.subr.bf16.mxu0 %v1761
    %2293 = vmatpush1.bf16.msra.mxu0 %v1760
    %2294 = vmatprep.subr.bf16.mxu0 %v1768
    %2295 = vmatpush1.bf16.msra.mxu0 %v1767
    %2296 = vmatprep.subr.bf16.mxu0 %v1775
    %2297 = vmatpush1.bf16.msra.mxu0 %v1774
    %2298 = vmatprep.subr.bf16.mxu0 %v1782
    %2299 = vmatpush1.bf16.msra.mxu0 %v1781
    %2300 = vmatprep.subr.bf16.mxu0 %v1789
    %2301 = vmatpush1.bf16.msra.mxu0 %v1788
    %2302 = vmatprep.subr.bf16.mxu0 %v1796
    %2303 = vmatpush1.bf16.msra.mxu0 %v1795
    %2304 = vmatprep.subr.bf16.mxu0 %v1803
    %2305 = vmatpush1.bf16.msra.mxu0 %v1802
    %2306 = vmatprep.subr.bf16.mxu0 %v1810
    %2307 = vmatpush1.bf16.msra.mxu0 %v1809
    %2308 = vmatprep.subr.bf16.mxu0 %v1817
    %2309 = vmatpush1.bf16.msra.mxu0 %v1816
    %2310 = vmatprep.subr.bf16.mxu0 %v1824
    %2311 = vmatpush1.bf16.msra.mxu0 %v1823
    %2312 = vmatprep.subr.bf16.mxu0 %v1831
    %2313 = vmatpush1.bf16.msra.mxu0 %v1830
    %2314 = vmatprep.subr.bf16.mxu0 %v1838
    %2315 = vmatpush1.bf16.msra.mxu0 %v1837
    %2316 = vmatprep.subr.bf16.mxu0 %v1845
    %2317 = vmatpush1.bf16.msra.mxu0 %v1844
    %2318 = vmatprep.subr.bf16.mxu0 %v1852
    %2319 = vmatpush1.bf16.msra.mxu0 %v1851
    %2320 = vmatprep.subr.bf16.mxu0 %v1859
    %2321 = vmatpush1.bf16.msra.mxu0 %v1858
    %2322 = vmatprep.subr.bf16.mxu0 %v1866
    %2323 = vmatpush1.bf16.msra.mxu0 %v1865
    %2324 = vmatprep.mubr.bf16.mxu0 %v758
    %2325 = vmatmul.mubr.bf16.gmra.mrb[0].mxu0 %v757
    %v2326 = vpop.f32.mrb[0].mxu0
    %v2327 = vadd.f32 %v1030, %v2326
    %v2328 = vpop.f32.mrb[0].mxu0
    %v2329 = vadd.f32 %v1034, %v2328
    %v2330 = vpop.f32.mrb[0].mxu0
    %v2331 = vadd.f32 %v1030, %v2330
    %v2332 = vpop.f32.mrb[0].mxu0
    %v2333 = vadd.f32 %v1034, %v2332
    %2334 = vdwg.mxu0
    %2335 = vmatprep.subr.bf16.mxu0 %v1873
    %2336 = vmatpush1.bf16.msra.mxu0 %v1872
    %2337 = vmatprep.subr.bf16.mxu0 %v1880
    %2338 = vmatpush1.bf16.msra.mxu0 %v1879
    %2339 = vmatprep.subr.bf16.mxu0 %v1887
    %2340 = vmatpush1.bf16.msra.mxu0 %v1886
    %2341 = vmatprep.subr.bf16.mxu0 %v1894
    %2342 = vmatpush1.bf16.msra.mxu0 %v1893
    %2343 = vmatprep.subr.bf16.mxu0 %v1901
    %2344 = vmatpush1.bf16.msra.mxu0 %v1900
    %2345 = vmatprep.subr.bf16.mxu0 %v1908
    %2346 = vmatpush1.bf16.msra.mxu0 %v1907
    %2347 = vmatprep.subr.bf16.mxu0 %v1915
    %2348 = vmatpush1.bf16.msra.mxu0 %v1914
    %2349 = vmatprep.subr.bf16.mxu0 %v1922
    %2350 = vmatpush1.bf16.msra.mxu0 %v1921
    %2351 = vmatprep.subr.bf16.mxu0 %v1929
    %2352 = vmatpush1.bf16.msra.mxu0 %v1928
    %2353 = vmatprep.subr.bf16.mxu0 %v1936
    %2354 = vmatpush1.bf16.msra.mxu0 %v1935
    %2355 = vmatprep.subr.bf16.mxu0 %v1943
    %2356 = vmatpush1.bf16.msra.mxu0 %v1942
    %2357 = vmatprep.subr.bf16.mxu0 %v1950
    %2358 = vmatpush1.bf16.msra.mxu0 %v1949
    %2359 = vmatprep.subr.bf16.mxu0 %v1957
    %2360 = vmatpush1.bf16.msra.mxu0 %v1956
    %2361 = vmatprep.subr.bf16.mxu0 %v1964
    %2362 = vmatpush1.bf16.msra.mxu0 %v1963
    %2363 = vmatprep.subr.bf16.mxu0 %v1971
    %2364 = vmatpush1.bf16.msra.mxu0 %v1970
    %2365 = vmatprep.subr.bf16.mxu0 %v1978
    %2366 = vmatpush1.bf16.msra.mxu0 %v1977
    %2367 = vmatprep.mubr.bf16.mxu0 %v760
    %2368 = vmatmul.mubr.bf16.gmra.mrb[0].mxu0 %v759
    %v2369 = vpop.f32.mrb[0].mxu0
    %v2370 = vadd.f32 %v2327, %v2369
    %v2371 = vpop.f32.mrb[0].mxu0
    %v2372 = vadd.f32 %v2329, %v2371
    %v2373 = vpop.f32.mrb[0].mxu0
    %v2374 = vadd.f32 %v2331, %v2373
    %v2375 = vpop.f32.mrb[0].mxu0
    %v2376 = vadd.f32 %v2333, %v2375
    %2377 = vdwg.mxu0
    %2378 = vmatprep.subr.bf16.mxu0 %v1763
    %2379 = vmatpush1.bf16.msra.mxu0 %v1762
    %2380 = vmatprep.subr.bf16.mxu0 %v1770
    %2381 = vmatpush1.bf16.msra.mxu0 %v1769
    %2382 = vmatprep.subr.bf16.mxu0 %v1777
    %2383 = vmatpush1.bf16.msra.mxu0 %v1776
    %2384 = vmatprep.subr.bf16.mxu0 %v1784
    %2385 = vmatpush1.bf16.msra.mxu0 %v1783
    %2386 = vmatprep.subr.bf16.mxu0 %v1791
    %2387 = vmatpush1.bf16.msra.mxu0 %v1790
    %2388 = vmatprep.subr.bf16.mxu0 %v1798
    %2389 = vmatpush1.bf16.msra.mxu0 %v1797
    %2390 = vmatprep.subr.bf16.mxu0 %v1805
    %2391 = vmatpush1.bf16.msra.mxu0 %v1804
    %2392 = vmatprep.subr.bf16.mxu0 %v1812
    %2393 = vmatpush1.bf16.msra.mxu0 %v1811
    %2394 = vmatprep.subr.bf16.mxu0 %v1819
    %2395 = vmatpush1.bf16.msra.mxu0 %v1818
    %2396 = vmatprep.subr.bf16.mxu0 %v1826
    %2397 = vmatpush1.bf16.msra.mxu0 %v1825
    %2398 = vmatprep.subr.bf16.mxu0 %v1833
    %2399 = vmatpush1.bf16.msra.mxu0 %v1832
    %2400 = vmatprep.subr.bf16.mxu0 %v1840
    %2401 = vmatpush1.bf16.msra.mxu0 %v1839
    %2402 = vmatprep.subr.bf16.mxu0 %v1847
    %2403 = vmatpush1.bf16.msra.mxu0 %v1846
    %2404 = vmatprep.subr.bf16.mxu0 %v1854
    %2405 = vmatpush1.bf16.msra.mxu0 %v1853
    %2406 = vmatprep.subr.bf16.mxu0 %v1861
    %2407 = vmatpush1.bf16.msra.mxu0 %v1860
    %2408 = vmatprep.subr.bf16.mxu0 %v1868
    %2409 = vmatpush1.bf16.msra.mxu0 %v1867
    %2410 = vmatprep.mubr.bf16.mxu0 %v758
    %2411 = vmatmul.mubr.bf16.gmra.mrb[0].mxu0 %v757
    %v2412 = vpop.f32.mrb[0].mxu0
    %v2413 = vadd.f32 %v1038, %v2412
    %v2414 = vpop.f32.mrb[0].mxu0
    %v2415 = vadd.f32 %v1042, %v2414
    %v2416 = vpop.f32.mrb[0].mxu0
    %v2417 = vadd.f32 %v1038, %v2416
    %v2418 = vpop.f32.mrb[0].mxu0
    %v2419 = vadd.f32 %v1042, %v2418
    %2420 = vdwg.mxu0
    %2421 = vmatprep.subr.bf16.mxu0 %v1875
    %2422 = vmatpush1.bf16.msra.mxu0 %v1874
    %2423 = vmatprep.subr.bf16.mxu0 %v1882
    %2424 = vmatpush1.bf16.msra.mxu0 %v1881
    %2425 = vmatprep.subr.bf16.mxu0 %v1889
    %2426 = vmatpush1.bf16.msra.mxu0 %v1888
    %2427 = vmatprep.subr.bf16.mxu0 %v1896
    %2428 = vmatpush1.bf16.msra.mxu0 %v1895
    %2429 = vmatprep.subr.bf16.mxu0 %v1903
    %2430 = vmatpush1.bf16.msra.mxu0 %v1902
    %2431 = vmatprep.subr.bf16.mxu0 %v1910
    %2432 = vmatpush1.bf16.msra.mxu0 %v1909
    %2433 = vmatprep.subr.bf16.mxu0 %v1917
    %2434 = vmatpush1.bf16.msra.mxu0 %v1916
    %2435 = vmatprep.subr.bf16.mxu0 %v1924
    %2436 = vmatpush1.bf16.msra.mxu0 %v1923
    %2437 = vmatprep.subr.bf16.mxu0 %v1931
    %2438 = vmatpush1.bf16.msra.mxu0 %v1930
    %2439 = vmatprep.subr.bf16.mxu0 %v1938
    %2440 = vmatpush1.bf16.msra.mxu0 %v1937
    %2441 = vmatprep.subr.bf16.mxu0 %v1945
    %2442 = vmatpush1.bf16.msra.mxu0 %v1944
    %2443 = vmatprep.subr.bf16.mxu0 %v1952
    %2444 = vmatpush1.bf16.msra.mxu0 %v1951
    %2445 = vmatprep.subr.bf16.mxu0 %v1959
    %2446 = vmatpush1.bf16.msra.mxu0 %v1958
    %2447 = vmatprep.subr.bf16.mxu0 %v1966
    %2448 = vmatpush1.bf16.msra.mxu0 %v1965
    %2449 = vmatprep.subr.bf16.mxu0 %v1973
    %2450 = vmatpush1.bf16.msra.mxu0 %v1972
    %2451 = vmatprep.subr.bf16.mxu0 %v1980
    %2452 = vmatpush1.bf16.msra.mxu0 %v1979
    %2453 = vmatprep.mubr.bf16.mxu0 %v760
    %2454 = vmatmul.mubr.bf16.gmra.mrb[0].mxu0 %v759
    %v2455 = vpop.f32.mrb[0].mxu0
    %v2456 = vadd.f32 %v2413, %v2455
    %v2457 = vpop.f32.mrb[0].mxu0
    %v2458 = vadd.f32 %v2415, %v2457
    %v2459 = vpop.f32.mrb[0].mxu0
    %v2460 = vadd.f32 %v2417, %v2459
    %v2461 = vpop.f32.mrb[0].mxu0
    %v2462 = vadd.f32 %v2419, %v2461
    %2463 = vdwg.mxu0
    %2464 = vmatprep.subr.bf16.mxu0 0
    %2465 = vmatpush1.bf16.msra.mxu0 %v1764
    %2466 = vmatprep.subr.bf16.mxu0 0
    %2467 = vmatpush1.bf16.msra.mxu0 %v1771
    %2468 = vmatprep.subr.bf16.mxu0 0
    %2469 = vmatpush1.bf16.msra.mxu0 %v1778
    %2470 = vmatprep.subr.bf16.mxu0 0
    %2471 = vmatpush1.bf16.msra.mxu0 %v1785
    %2472 = vmatprep.subr.bf16.mxu0 0
    %2473 = vmatpush1.bf16.msra.mxu0 %v1792
    %2474 = vmatprep.subr.bf16.mxu0 0
    %2475 = vmatpush1.bf16.msra.mxu0 %v1799
    %2476 = vmatprep.subr.bf16.mxu0 0
    %2477 = vmatpush1.bf16.msra.mxu0 %v1806
    %2478 = vmatprep.subr.bf16.mxu0 0
    %2479 = vmatpush1.bf16.msra.mxu0 %v1813
    %2480 = vmatprep.subr.bf16.mxu0 0
    %2481 = vmatpush1.bf16.msra.mxu0 %v1820
    %2482 = vmatprep.subr.bf16.mxu0 0
    %2483 = vmatpush1.bf16.msra.mxu0 %v1827
    %2484 = vmatprep.subr.bf16.mxu0 0
    %2485 = vmatpush1.bf16.msra.mxu0 %v1834
    %2486 = vmatprep.subr.bf16.mxu0 0
    %2487 = vmatpush1.bf16.msra.mxu0 %v1841
    %2488 = vmatprep.subr.bf16.mxu0 0
    %2489 = vmatpush1.bf16.msra.mxu0 %v1848
    %2490 = vmatprep.subr.bf16.mxu0 0
    %2491 = vmatpush1.bf16.msra.mxu0 %v1855
    %2492 = vmatprep.subr.bf16.mxu0 0
    %2493 = vmatpush1.bf16.msra.mxu0 %v1862
    %2494 = vmatprep.subr.bf16.mxu0 0
    %2495 = vmatpush1.bf16.msra.mxu0 %v1869
    %2496 = vmatprep.mubr.bf16.mxu0 %v758
    %2497 = vmatmul.mubr.bf16.gmra.mrb[0].mxu0 %v757
    %v2498 = vpop.f32.mrb[0].mxu0
    %v2499 = vadd.f32 %v1046, %v2498
    %v2500 = vpop.f32.mrb[0].mxu0
    %v2501 = vpop.f32.mrb[0].mxu0
    %v2502 = vadd.f32 %v1046, %v2501
    %v2503 = vpop.f32.mrb[0].mxu0
    %2504 = vdwg.mxu0
    %2505 = vmatprep.subr.bf16.mxu0 0
    %2506 = vmatpush1.bf16.msra.mxu0 %v1876
    %2507 = vmatprep.subr.bf16.mxu0 0
    %2508 = vmatpush1.bf16.msra.mxu0 %v1883
    %2509 = vmatprep.subr.bf16.mxu0 0
    %2510 = vmatpush1.bf16.msra.mxu0 %v1890
    %2511 = vmatprep.subr.bf16.mxu0 0
    %2512 = vmatpush1.bf16.msra.mxu0 %v1897
    %2513 = vmatprep.subr.bf16.mxu0 0
    %2514 = vmatpush1.bf16.msra.mxu0 %v1904
    %2515 = vmatprep.subr.bf16.mxu0 0
    %2516 = vmatpush1.bf16.msra.mxu0 %v1911
    %2517 = vmatprep.subr.bf16.mxu0 0
    %2518 = vmatpush1.bf16.msra.mxu0 %v1918
    %2519 = vmatprep.subr.bf16.mxu0 0
    %2520 = vmatpush1.bf16.msra.mxu0 %v1925
    %2521 = vmatprep.subr.bf16.mxu0 0
    %2522 = vmatpush1.bf16.msra.mxu0 %v1932
    %2523 = vmatprep.subr.bf16.mxu0 0
    %2524 = vmatpush1.bf16.msra.mxu0 %v1939
    %2525 = vmatprep.subr.bf16.mxu0 0
    %2526 = vmatpush1.bf16.msra.mxu0 %v1946
    %2527 = vmatprep.subr.bf16.mxu0 0
    %2528 = vmatpush1.bf16.msra.mxu0 %v1953
    %2529 = vmatprep.subr.bf16.mxu0 0
    %2530 = vmatpush1.bf16.msra.mxu0 %v1960
    %2531 = vmatprep.subr.bf16.mxu0 0
    %2532 = vmatpush1.bf16.msra.mxu0 %v1967
    %2533 = vmatprep.subr.bf16.mxu0 0
    %2534 = vmatpush1.bf16.msra.mxu0 %v1974
    %2535 = vmatprep.subr.bf16.mxu0 0
    %2536 = vmatpush1.bf16.msra.mxu0 %v1981
    %2537 = vmatprep.mubr.bf16.mxu0 %v760
    %2538 = vmatmul.mubr.bf16.gmra.mrb[0].mxu0 %v759
    %v2539 = vpop.f32.mrb[0].mxu0
    %v2540 = vadd.f32 %v2499, %v2539
    %v2541 = vpop.f32.mrb[0].mxu0
    %v2542 = vpop.f32.mrb[0].mxu0
    %v2543 = vadd.f32 %v2502, %v2542
    %v2544 = vpop.f32.mrb[0].mxu0
    %2545 = vdwg.mxu0
    %v2546 = vpack.c.bf16 %v2288, %v2284
    %v2547 = vpack.c.bf16 %v2290, %v2286
    %v2548 = vpack.c.bf16 %v2374, %v2370
    %v2549 = vpack.c.bf16 %v2376, %v2372
    %v2550 = vpack.c.bf16 %v2460, %v2456
    %v2551 = vpack.c.bf16 %v2462, %v2458
    %v2552 = vpack.c.bf16 %v2543, %v2540
    %v2560 = vunpack.c.l.b16 %v2546
    %v2561 = vunpack.c.l.b16 %v2547
    %v2562 = vunpack.c.l.b16 %v2548
    %v2563 = vunpack.c.l.b16 %v2549
    %v2564 = vunpack.c.l.b16 %v2550
    %v2565 = vunpack.c.l.b16 %v2551
    %v2566 = vunpack.c.l.b16 %v2552
    %v2567 = vunpack.c.h.b16 %v2546
    %v2568 = vunpack.c.h.b16 %v2547
    %v2569 = vunpack.c.h.b16 %v2548
    %v2570 = vunpack.c.h.b16 %v2549
    %v2571 = vunpack.c.h.b16 %v2550
    %v2572 = vunpack.c.h.b16 %v2551
    %v2573 = vunpack.c.h.b16 %v2552
    %v2574 = vpack.c.b16 %v2561, %v2560
    %v2575 = vpack.c.b16 %v2563, %v2562
    %v2576 = vpack.c.b16 %v2565, %v2564
    %v2577 = vpack.c.b16 %v2566, %v2566
    %v2578 = vpack.c.b16 %v2568, %v2567
    %v2579 = vpack.c.b16 %v2570, %v2569
    %v2580 = vpack.c.b16 %v2572, %v2571
    %v2581 = vpack.c.b16 %v2573, %v2573
    %2590 = vst [vmem:[%s7] sm:$0xff] %v2574
    %2591 = vst [vmem:[%s7 + $0x8] sm:$0xff] %v2575
    %2592 = vst [vmem:[%s7 + $0x10] sm:$0xff] %v2576
    %2593 = vst [vmem:[%s7 + $0x18] sm:$0xf] %v2577
    %2594 = vst [vmem:[%s7 + $0x1c] sm:$0xff] %v2578
    %2595 = vst [vmem:[%s7 + $0x24] sm:$0xff] %v2579
    %2596 = vst [vmem:[%s7 + $0x2c] sm:$0xff] %v2580
    %2597 = vst [vmem:[%s7 + $0x34] sm:$0xf] %v2581
    // Predicated region
    $region42: #{gnet_forward.1} parent=1 // pred_check
      _
    $region43: #{gnet_forward.1} parent=1 // pred_check_branch
      %2599 = sbr.rel (0) target = $region45
    $region44: #{gnet_forward.1} parent=1 // pred_region
      _
    $region45: #{gnet_forward.1} parent=1 // pred_fallthru
      _
    // Predicated region
    $region46: #{gnet_forward.1} parent=1 // pred_check
      _
    $region47: #{gnet_forward.1} parent=1 // pred_check_branch
      %2601 = sbr.rel (0) target = $region49
    $region48: #{gnet_forward.1} parent=1 // pred_region
      _
    $region49: #{gnet_forward.1} parent=1 // pred_fallthru
      _
    %2602 = vsyncpa [#allocation3], 1
    %2603 = vsyncpa [#allocation5], 1

</llo_original>
